<compile_context>
chip_gen: v5e
topology: v5e:2x2
jax: 0.10.0
libtpu: 0.0.40
codegen_flags: <defaults>
</compile_context>

<pallas_src>
import functools

import jax
import jax.numpy as jnp
from jax.experimental import pallas as pl
from jax.experimental.pallas import tpu as pltpu

LAYER_DIMS = [(784, 512), (512, 256), (256, 128), (128, 64), (64, 10)]
OUT_PAD = 128          # lane-dense final-layer width (>= 10, multiple of 128)
MAX_TILE_B = 256       # fills the 256-wide MXU M dim on v6e/v7x; fine on v5e


def _round_up(x, m):
    return ((x + m - 1) // m) * m


def mlp_kernel(x_ref,
               w1_ref, b1_ref, w2_ref, b2_ref, w3_ref, b3_ref,
               w4_ref, b4_ref, w5_ref, b5_ref,
               o_ref):
    """Fused 5-layer MLP: (Linear+ReLU) x 4 then final Linear (no activation).

    Matmuls run in bf16 on the MXU with f32 accumulation; bias + ReLU stay in
    f32 on the VPU; activations are cast back to bf16 between layers.
    """
    def layer(h, w_ref, b_ref, relu):
        acc = jnp.dot(h, w_ref[...], preferred_element_type=jnp.float32)
        acc = acc + b_ref[...]
        if relu:
            acc = jnp.maximum(acc, 0.0)
        return acc

    h = x_ref[...]                                     # bf16 input tile
    h = layer(h, w1_ref, b1_ref, True).astype(jnp.bfloat16)
    h = layer(h, w2_ref, b2_ref, True).astype(jnp.bfloat16)
    h = layer(h, w3_ref, b3_ref, True).astype(jnp.bfloat16)
    h = layer(h, w4_ref, b4_ref, True).astype(jnp.bfloat16)
    out = layer(h, w5_ref, b5_ref, False)              # (tb, 128) f32
    o_ref[...] = out.astype(o_ref.dtype)


def init_params(key):
    """PyTorch-style default init: U(-1/sqrt(fan_in), 1/sqrt(fan_in)), f32."""
    params = []
    for (fan_in, fan_out) in LAYER_DIMS:
        key, kw, kb = jax.random.split(key, 3)
        bound = 1.0 / (fan_in ** 0.5)
        # stored as (in, out) so the kernel can do x @ W directly
        w = jax.random.uniform(kw, (fan_in, fan_out), jnp.float32, -bound, bound)
        b = jax.random.uniform(kb, (1, fan_out), jnp.float32, -bound, bound)
        params.append((w, b))
    return params


def prepare_params(params):
    """One-time conversion to kernel layout: bf16 weights (halves weight DMA and
    VMEM residency), f32 biases, and the final layer zero-padded to OUT_PAD
    output columns for lane-dense stores."""
    prepped = []
    for li, (w, b) in enumerate(params):
        if li == len(params) - 1:
            w = jnp.pad(w, ((0, 0), (0, OUT_PAD - w.shape[1])))
            b = jnp.pad(b, ((0, 0), (0, OUT_PAD - b.shape[1])))
        prepped.append((w.astype(jnp.bfloat16), b.astype(jnp.float32)))
    return prepped


@functools.partial(jax.jit, static_argnames=("tile_b",))
def net_forward(x, prepped_params, tile_b=MAX_TILE_B):
    # Glue: flatten like x.view(-1, 784); bf16 input halves the input DMA.
    x2d = x.reshape(-1, 784).astype(jnp.bfloat16)
    B = x2d.shape[0]
    # Whole batch in one block when B is small; otherwise tile_b-row tiles
    # (grid axis is "parallel" so multiple steps shard across TCs on v7x).
    tb = min(tile_b, _round_up(B, 8))
    Bp = _round_up(B, tb)
    if Bp != B:
        x2d = jnp.pad(x2d, ((0, Bp - B), (0, 0)))

    flat_params = []
    in_specs = [pl.BlockSpec((tb, 784), lambda i: (i, 0))]
    for (w, b) in prepped_params:
        flat_params.extend([w, b])
        # Constant index maps -> weights/biases stay VMEM-resident across the
        # whole grid. (pl.Buffered(1) would drop the redundant second buffer,
        # but total bf16 weights are ~1.2 MB so VMEM headroom is a non-issue.)
        in_specs.append(pl.BlockSpec(w.shape, lambda i: (0, 0)))
        in_specs.append(pl.BlockSpec(b.shape, lambda i: (0, 0)))

    out = pl.pallas_call(
        mlp_kernel,
        out_shape=jax.ShapeDtypeStruct((Bp, OUT_PAD), jnp.float32),
        grid_spec=pltpu.PrefetchScalarGridSpec(
            num_scalar_prefetch=0,
            grid=(Bp // tb,),
            in_specs=in_specs,
            out_specs=pl.BlockSpec((tb, OUT_PAD), lambda i: (i, 0)),
        ),
        compiler_params=pltpu.CompilerParams(
            dimension_semantics=("parallel",)),
    )(x2d, *flat_params)
    # K-padding of layer 1 (784 -> 896) intentionally skipped: only worth it
    # if the kernel becomes MXU-cadence bound.
    return out[:B, :10]


def reference_forward(x, params):
    """Pure-JAX reference mirroring the kernel's numerics (bf16 weights and
    activations, f32 accumulation) so tolerances can stay reasonably tight."""
    h = x.reshape(-1, 784).astype(jnp.bfloat16)
    for li, (w, b) in enumerate(params):
        h = jnp.dot(h, w.astype(jnp.bfloat16),
                    preferred_element_type=jnp.float32) + b
        if li < len(params) - 1:
            h = jnp.maximum(h, 0.0).astype(jnp.bfloat16)
    return h


if __name__ == "__main__":
    key = jax.random.PRNGKey(0)
    kx, kp = jax.random.split(key)
    # MNIST-like NCHW input; forward flattens to (-1, 784)
    x = jax.random.normal(kx, (8, 1, 28, 28), jnp.float32)
    params = init_params(kp)
    prepped = prepare_params(params)

    out = net_forward(x, prepped)
    jax.block_until_ready(out)

    ref = reference_forward(x, params)
    assert out.shape == (8, 10)
    assert jnp.allclose(out, ref, atol=2e-2, rtol=2e-2), "mismatch vs reference"
    print("KERNEL_OK")
</pallas_src>

<mosaic_0001>
module attributes {stable_mosaic.version = 11 : i64} {
  func.func @mlp_kernel(%arg0: i32, %arg1: memref<8x784xbf16, #tpu.memory_space<vmem>>, %arg2: memref<784x512xbf16, #tpu.memory_space<vmem>>, %arg3: memref<1x512xf32, #tpu.memory_space<vmem>>, %arg4: memref<512x256xbf16, #tpu.memory_space<vmem>>, %arg5: memref<1x256xf32, #tpu.memory_space<vmem>>, %arg6: memref<256x128xbf16, #tpu.memory_space<vmem>>, %arg7: memref<1x128xf32, #tpu.memory_space<vmem>>, %arg8: memref<128x64xbf16, #tpu.memory_space<vmem>>, %arg9: memref<1x64xf32, #tpu.memory_space<vmem>>, %arg10: memref<64x128xbf16, #tpu.memory_space<vmem>>, %arg11: memref<1x128xf32, #tpu.memory_space<vmem>>, %arg12: memref<8x128xf32, #tpu.memory_space<vmem>>) attributes {dimension_semantics = [#tpu.dimension_semantics<parallel>], iteration_bounds = array<i64: 1>, scalar_prefetch = 0 : i64, scratch_operands = 0 : i64, tpu.core_type = #tpu.core_type<tc>, window_params = [{transform_indices = @transform_0, window_bounds = array<i64: 8, 784>}, {pipeline_mode = #tpu.pipeline_mode<synchronous>, transform_indices = @transform_1, window_bounds = array<i64: 784, 512>}, {pipeline_mode = #tpu.pipeline_mode<synchronous>, transform_indices = @transform_2, window_bounds = array<i64: 1, 512>}, {pipeline_mode = #tpu.pipeline_mode<synchronous>, transform_indices = @transform_3, window_bounds = array<i64: 512, 256>}, {pipeline_mode = #tpu.pipeline_mode<synchronous>, transform_indices = @transform_4, window_bounds = array<i64: 1, 256>}, {pipeline_mode = #tpu.pipeline_mode<synchronous>, transform_indices = @transform_5, window_bounds = array<i64: 256, 128>}, {pipeline_mode = #tpu.pipeline_mode<synchronous>, transform_indices = @transform_6, window_bounds = array<i64: 1, 128>}, {pipeline_mode = #tpu.pipeline_mode<synchronous>, transform_indices = @transform_7, window_bounds = array<i64: 128, 64>}, {pipeline_mode = #tpu.pipeline_mode<synchronous>, transform_indices = @transform_8, window_bounds = array<i64: 1, 64>}, {pipeline_mode = #tpu.pipeline_mode<synchronous>, transform_indices = @transform_9, window_bounds = array<i64: 64, 128>}, {pipeline_mode = #tpu.pipeline_mode<synchronous>, transform_indices = @transform_10, window_bounds = array<i64: 1, 128>}, {transform_indices = @transform_11, window_bounds = array<i64: 8, 128>}]} {
    %c0 = arith.constant 0 : index
    %c0_0 = arith.constant 0 : index
    %0 = vector.load %arg1[%c0, %c0_0] : memref<8x784xbf16, #tpu.memory_space<vmem>>, vector<8x784xbf16>
    %c0_1 = arith.constant 0 : index
    %c0_2 = arith.constant 0 : index
    %1 = vector.load %arg2[%c0_1, %c0_2] : memref<784x512xbf16, #tpu.memory_space<vmem>>, vector<784x512xbf16>
    %cst = arith.constant dense<0.000000e+00> : vector<8x512xf32>
    %2 = tpu.matmul %0, %1, %cst {dimension_numbers = #tpu.dot_dimension_numbers<[1], [0], [0], [1], [0, 0, 1, 1], [], []>} : vector<8x784xbf16>, vector<784x512xbf16>, vector<8x512xf32> -> vector<8x512xf32>
    %c0_3 = arith.constant 0 : index
    %c0_4 = arith.constant 0 : index
    %3 = vector.load %arg3[%c0_3, %c0_4] : memref<1x512xf32, #tpu.memory_space<vmem>>, vector<1x512xf32>
    %4 = vector.broadcast %3 : vector<1x512xf32> to vector<8x512xf32>
    %5 = arith.addf %2, %4 : vector<8x512xf32>
    %cst_5 = arith.constant 0.000000e+00 : f32
    %6 = vector.broadcast %cst_5 : f32 to vector<8x512xf32>
    %7 = arith.maximumf %5, %6 : vector<8x512xf32>
    %8 = arith.truncf %7 : vector<8x512xf32> to vector<8x512xbf16>
    %c0_6 = arith.constant 0 : index
    %c0_7 = arith.constant 0 : index
    %9 = vector.load %arg4[%c0_6, %c0_7] : memref<512x256xbf16, #tpu.memory_space<vmem>>, vector<512x256xbf16>
    %cst_8 = arith.constant dense<0.000000e+00> : vector<8x256xf32>
    %10 = tpu.matmul %8, %9, %cst_8 {dimension_numbers = #tpu.dot_dimension_numbers<[1], [0], [0], [1], [0, 0, 1, 1], [], []>} : vector<8x512xbf16>, vector<512x256xbf16>, vector<8x256xf32> -> vector<8x256xf32>
    %c0_9 = arith.constant 0 : index
    %c0_10 = arith.constant 0 : index
    %11 = vector.load %arg5[%c0_9, %c0_10] : memref<1x256xf32, #tpu.memory_space<vmem>>, vector<1x256xf32>
    %12 = vector.broadcast %11 : vector<1x256xf32> to vector<8x256xf32>
    %13 = arith.addf %10, %12 : vector<8x256xf32>
    %cst_11 = arith.constant 0.000000e+00 : f32
    %14 = vector.broadcast %cst_11 : f32 to vector<8x256xf32>
    %15 = arith.maximumf %13, %14 : vector<8x256xf32>
    %16 = arith.truncf %15 : vector<8x256xf32> to vector<8x256xbf16>
    %c0_12 = arith.constant 0 : index
    %c0_13 = arith.constant 0 : index
    %17 = vector.load %arg6[%c0_12, %c0_13] : memref<256x128xbf16, #tpu.memory_space<vmem>>, vector<256x128xbf16>
    %cst_14 = arith.constant dense<0.000000e+00> : vector<8x128xf32>
    %18 = tpu.matmul %16, %17, %cst_14 {dimension_numbers = #tpu.dot_dimension_numbers<[1], [0], [0], [1], [0, 0, 1, 1], [], []>} : vector<8x256xbf16>, vector<256x128xbf16>, vector<8x128xf32> -> vector<8x128xf32>
    %c0_15 = arith.constant 0 : index
    %c0_16 = arith.constant 0 : index
    %19 = vector.load %arg7[%c0_15, %c0_16] : memref<1x128xf32, #tpu.memory_space<vmem>>, vector<1x128xf32>
    %20 = vector.broadcast %19 : vector<1x128xf32> to vector<8x128xf32>
    %21 = arith.addf %18, %20 : vector<8x128xf32>
    %cst_17 = arith.constant 0.000000e+00 : f32
    %22 = vector.broadcast %cst_17 : f32 to vector<8x128xf32>
    %23 = arith.maximumf %21, %22 : vector<8x128xf32>
    %24 = arith.truncf %23 : vector<8x128xf32> to vector<8x128xbf16>
    %c0_18 = arith.constant 0 : index
    %c0_19 = arith.constant 0 : index
    %25 = vector.load %arg8[%c0_18, %c0_19] : memref<128x64xbf16, #tpu.memory_space<vmem>>, vector<128x64xbf16>
    %cst_20 = arith.constant dense<0.000000e+00> : vector<8x64xf32>
    %26 = tpu.matmul %24, %25, %cst_20 {dimension_numbers = #tpu.dot_dimension_numbers<[1], [0], [0], [1], [0, 0, 1, 1], [], []>} : vector<8x128xbf16>, vector<128x64xbf16>, vector<8x64xf32> -> vector<8x64xf32>
    %c0_21 = arith.constant 0 : index
    %c0_22 = arith.constant 0 : index
    %27 = vector.load %arg9[%c0_21, %c0_22] : memref<1x64xf32, #tpu.memory_space<vmem>>, vector<1x64xf32>
    %28 = vector.broadcast %27 : vector<1x64xf32> to vector<8x64xf32>
    %29 = arith.addf %26, %28 : vector<8x64xf32>
    %cst_23 = arith.constant 0.000000e+00 : f32
    %30 = vector.broadcast %cst_23 : f32 to vector<8x64xf32>
    %31 = arith.maximumf %29, %30 : vector<8x64xf32>
    %32 = arith.truncf %31 : vector<8x64xf32> to vector<8x64xbf16>
    %c0_24 = arith.constant 0 : index
    %c0_25 = arith.constant 0 : index
    %33 = vector.load %arg10[%c0_24, %c0_25] : memref<64x128xbf16, #tpu.memory_space<vmem>>, vector<64x128xbf16>
    %cst_26 = arith.constant dense<0.000000e+00> : vector<8x128xf32>
    %34 = tpu.matmul %32, %33, %cst_26 {dimension_numbers = #tpu.dot_dimension_numbers<[1], [0], [0], [1], [0, 0, 1, 1], [], []>} : vector<8x64xbf16>, vector<64x128xbf16>, vector<8x128xf32> -> vector<8x128xf32>
    %c0_27 = arith.constant 0 : index
    %c0_28 = arith.constant 0 : index
    %35 = vector.load %arg11[%c0_27, %c0_28] : memref<1x128xf32, #tpu.memory_space<vmem>>, vector<1x128xf32>
    %36 = vector.broadcast %35 : vector<1x128xf32> to vector<8x128xf32>
    %37 = arith.addf %34, %36 : vector<8x128xf32>
    %c0_29 = arith.constant 0 : index
    %c0_30 = arith.constant 0 : index
    %38 = vector.load %arg12[%c0_29, %c0_30] : memref<8x128xf32, #tpu.memory_space<vmem>>, vector<8x128xf32>
    tpu.vector_store %arg12[%c0_29, %c0_30], %37 {strides = array<i32>} : memref<8x128xf32, #tpu.memory_space<vmem>>, vector<8x128xf32>,
    return
  }
  func.func @transform_0(%arg0: i32) -> (i32, i32) {
    %c0_i32 = arith.constant 0 : i32
    %c0_i32_0 = arith.constant 0 : i32
    return %arg0, %c0_i32 : i32, i32
  }
  func.func @transform_1(%arg0: i32) -> (i32, i32) {
    %c0_i32 = arith.constant 0 : i32
    %c0_i32_0 = arith.constant 0 : i32
    %c0_i32_1 = arith.constant 0 : i32
    return %c0_i32, %c0_i32_0 : i32, i32
  }
  func.func @transform_2(%arg0: i32) -> (i32, i32) {
    %c0_i32 = arith.constant 0 : i32
    %c0_i32_0 = arith.constant 0 : i32
    %c0_i32_1 = arith.constant 0 : i32
    return %c0_i32, %c0_i32_0 : i32, i32
  }
  func.func @transform_3(%arg0: i32) -> (i32, i32) {
    %c0_i32 = arith.constant 0 : i32
    %c0_i32_0 = arith.constant 0 : i32
    %c0_i32_1 = arith.constant 0 : i32
    return %c0_i32, %c0_i32_0 : i32, i32
  }
  func.func @transform_4(%arg0: i32) -> (i32, i32) {
    %c0_i32 = arith.constant 0 : i32
    %c0_i32_0 = arith.constant 0 : i32
    %c0_i32_1 = arith.constant 0 : i32
    return %c0_i32, %c0_i32_0 : i32, i32
  }
  func.func @transform_5(%arg0: i32) -> (i32, i32) {
    %c0_i32 = arith.constant 0 : i32
    %c0_i32_0 = arith.constant 0 : i32
    %c0_i32_1 = arith.constant 0 : i32
    return %c0_i32, %c0_i32_0 : i32, i32
  }
  func.func @transform_6(%arg0: i32) -> (i32, i32) {
    %c0_i32 = arith.constant 0 : i32
    %c0_i32_0 = arith.constant 0 : i32
    %c0_i32_1 = arith.constant 0 : i32
    return %c0_i32, %c0_i32_0 : i32, i32
  }
  func.func @transform_7(%arg0: i32) -> (i32, i32) {
    %c0_i32 = arith.constant 0 : i32
    %c0_i32_0 = arith.constant 0 : i32
    %c0_i32_1 = arith.constant 0 : i32
    return %c0_i32, %c0_i32_0 : i32, i32
  }
  func.func @transform_8(%arg0: i32) -> (i32, i32) {
    %c0_i32 = arith.constant 0 : i32
    %c0_i32_0 = arith.constant 0 : i32
    %c0_i32_1 = arith.constant 0 : i32
    return %c0_i32, %c0_i32_0 : i32, i32
  }
  func.func @transform_9(%arg0: i32) -> (i32, i32) {
    %c0_i32 = arith.constant 0 : i32
    %c0_i32_0 = arith.constant 0 : i32
    %c0_i32_1 = arith.constant 0 : i32
    return %c0_i32, %c0_i32_0 : i32, i32
  }
  func.func @transform_10(%arg0: i32) -> (i32, i32) {
    %c0_i32 = arith.constant 0 : i32
    %c0_i32_0 = arith.constant 0 : i32
    %c0_i32_1 = arith.constant 0 : i32
    return %c0_i32, %c0_i32_0 : i32, i32
  }
  func.func @transform_11(%arg0: i32) -> (i32, i32) {
    %c0_i32 = arith.constant 0 : i32
    %c0_i32_0 = arith.constant 0 : i32
    return %arg0, %c0_i32 : i32, i32
  }
}

</mosaic_0001>

<llo_original>
// kernel: net_forward.1
$region0: #{net_forward.1}
  #allocation0 [shape = 'u32[]', space=smem, size = 0x4, offset = 0x4, fixed_abs, tag = 'smem constant byte address 0x4 - core index']
  #allocation1 [shape = 'u32[72,128]{1,0:T(1,128)}', space=vmem, size = 0x9000, scoped, tag = 'internal scratch']
  %s0 = inlined_call_operand.vmem [shape: bf16[8,784], index: 0, kind: input, shape index: {}]
  %s1 = inlined_call_operand.hbm [shape: bf16[784,512], index: 1, kind: input, shape index: {}]
  %s2 = inlined_call_operand.vmem [shape: f32[1,512], index: 2, kind: input, shape index: {}]
  %s3 = inlined_call_operand.hbm [shape: bf16[512,256], index: 3, kind: input, shape index: {}]
  %s4 = inlined_call_operand.vmem [shape: f32[1,256], index: 4, kind: input, shape index: {}]
  %s5 = inlined_call_operand.vmem [shape: bf16[256,128], index: 5, kind: input, shape index: {}]
  %s6 = inlined_call_operand.vmem [shape: f32[1,128], index: 6, kind: input, shape index: {}]
  %s7 = inlined_call_operand.vmem [shape: bf16[128,64], index: 7, kind: input, shape index: {}]
  %s8 = inlined_call_operand.vmem [shape: f32[1,64], index: 8, kind: input, shape index: {}]
  %s9 = inlined_call_operand.vmem [shape: bf16[64,128], index: 9, kind: input, shape index: {}]
  %s10 = inlined_call_operand.vmem [shape: f32[1,128], index: 10, kind: input, shape index: {}]
  %s11 = inlined_call_operand.hbm [shape: f32[8,128], index: 11, kind: output, shape index: {}]
  %s12 = sld [smem:[#allocation0]]
  $region62: #{net_forward.1} parent=0
    _
  %s14 = ssub.s32 1, %s12
  %s15 = scalar_select 0, %s14, %s12
  $region1: #{net_forward.1} parent=0
    #allocation2 [shape = 'u8[802816]{0}', space=vmem, size = 0xc4000, scoped, tag = 'input window, operand 1, single buffered']
    #allocation3 [shape = 's32[1]{0}', space=sflag, size = 0x4, scoped, tag = 'scoped memory for net_forward.1']
    #allocation4 [shape = 's32[1]{0}', space=sflag, size = 0x4, scoped, tag = 'scoped memory for net_forward.1']
    #allocation5 [shape = 'u8[262144]{0}', space=vmem, size = 0x40000, scoped, tag = 'input window, operand 3, single buffered']
    #allocation6 [shape = 's32[1]{0}', space=sflag, size = 0x4, scoped, tag = 'scoped memory for net_forward.1']
    #allocation7 [shape = 'u8[4096]{0}', space=vmem, size = 0x1000, scoped, tag = 'output window, operand 0, single buffered']
    %16 = vsyncpa [#allocation3], 0
    %17 = vsyncpa [#allocation6], 0
    %18 = vsyncpa [#allocation4], 0
    // Predicated region
    $region2: #{net_forward.1} parent=1 // pred_check
      _
    $region3: #{net_forward.1} parent=1 // pred_check_branch
      %20 = sbr.rel (0) target = $region5
    $region4: #{net_forward.1} parent=1 // pred_region
      _
    $region5: #{net_forward.1} parent=1 // pred_fallthru
      _
    // Predicated region
    $region6: #{net_forward.1} parent=1 // pred_check
      _
    $region7: #{net_forward.1} parent=1 // pred_check_branch
      %22 = sbr.rel (0) target = $region9
    $region8: #{net_forward.1} parent=1 // pred_region
      %24 = vsyncadd [#allocation3], 0
      %s25 = sshll.u32 %s1, 4
      %s26 = int_to_ptr.hbm [resolvable:$true] %s25
      %s27 = sshll.u32 [#allocation2], 4
      %s28 = int_to_ptr.vmem [resolvable:$true] %s27
      %33 = dma.hbm_to_vmem [thread:$0]  %s26, 25088, %s28, [#allocation3], 256, 256, 16
    $region9: #{net_forward.1} parent=1 // pred_fallthru
      _
    // Predicated region
    $region10: #{net_forward.1} parent=1 // pred_check
      _
    $region11: #{net_forward.1} parent=1 // pred_check_branch
      %35 = sbr.rel (0) target = $region13
    $region12: #{net_forward.1} parent=1 // pred_region
      _
    $region13: #{net_forward.1} parent=1 // pred_fallthru
      _
    // Predicated region
    $region14: #{net_forward.1} parent=1 // pred_check
      _
    $region15: #{net_forward.1} parent=1 // pred_check_branch
      %37 = sbr.rel (0) target = $region17
    $region16: #{net_forward.1} parent=1 // pred_region
      %39 = vsyncadd [#allocation6], 0
      %s40 = sshll.u32 %s3, 4
      %s41 = int_to_ptr.hbm [resolvable:$true] %s40
      %s42 = sshll.u32 [#allocation5], 4
      %s43 = int_to_ptr.vmem [resolvable:$true] %s42
      %48 = dma.hbm_to_vmem [thread:$0]  %s41, 8192, %s43, [#allocation6], 128, 128, 8
    $region17: #{net_forward.1} parent=1 // pred_fallthru
      _
    // Predicated region
    $region18: #{net_forward.1} parent=1 // pred_check
      _
    $region19: #{net_forward.1} parent=1 // pred_check_branch
      %50 = sbr.rel (0) target = $region21
    $region20: #{net_forward.1} parent=1 // pred_region
      _
    $region21: #{net_forward.1} parent=1 // pred_fallthru
      _
    // Predicated region
    $region22: #{net_forward.1} parent=1 // pred_check
      _
    $region23: #{net_forward.1} parent=1 // pred_check_branch
      %52 = sbr.rel (0) target = $region25
    $region24: #{net_forward.1} parent=1 // pred_region
      _
    $region25: #{net_forward.1} parent=1 // pred_fallthru
      _
    // Predicated region
    $region26: #{net_forward.1} parent=1 // pred_check
      _
    $region27: #{net_forward.1} parent=1 // pred_check_branch
      %54 = sbr.rel (0) target = $region29
    $region28: #{net_forward.1} parent=1 // pred_region
      _
    $region29: #{net_forward.1} parent=1 // pred_fallthru
      _
    // Predicated region
    $region30: #{net_forward.1} parent=1 // pred_check
      _
    $region31: #{net_forward.1} parent=1 // pred_check_branch
      %56 = sbr.rel (0) target = $region33
    $region32: #{net_forward.1} parent=1 // pred_region
      _
    $region33: #{net_forward.1} parent=1 // pred_fallthru
      _
    // Predicated region
    $region34: #{net_forward.1} parent=1 // pred_check
      _
    $region35: #{net_forward.1} parent=1 // pred_check_branch
      %58 = sbr.rel (0) target = $region37
    $region36: #{net_forward.1} parent=1 // pred_region
      _
    $region37: #{net_forward.1} parent=1 // pred_fallthru
      _
    // Predicated region
    $region38: #{net_forward.1} parent=1 // pred_check
      _
    $region39: #{net_forward.1} parent=1 // pred_check_branch
      %60 = sbr.rel (0) target = $region41
    $region40: #{net_forward.1} parent=1 // pred_region
      _
    $region41: #{net_forward.1} parent=1 // pred_fallthru
      _
    // Predicated region
    $region42: #{net_forward.1} parent=1 // pred_check
      _
    $region43: #{net_forward.1} parent=1 // pred_check_branch
      %62 = sbr.rel (0) target = $region45
    $region44: #{net_forward.1} parent=1 // pred_region
      _
    $region45: #{net_forward.1} parent=1 // pred_fallthru
      _
    // Predicated region
    $region46: #{net_forward.1} parent=1 // pred_check
      _
    $region47: #{net_forward.1} parent=1 // pred_check_branch
      %64 = sbr.rel (0) target = $region49
    $region48: #{net_forward.1} parent=1 // pred_region
      %66 = dma.done [#allocation3], 25088
    $region49: #{net_forward.1} parent=1 // pred_fallthru
      _
    // Predicated region
    $region50: #{net_forward.1} parent=1 // pred_check
      _
    $region51: #{net_forward.1} parent=1 // pred_check_branch
      %68 = sbr.rel (0) target = $region53
    $region52: #{net_forward.1} parent=1 // pred_region
      %70 = dma.done [#allocation6], 8192
    $region53: #{net_forward.1} parent=1 // pred_fallthru
      _
    %v72 = vld [vmem:[%s0] sm:$0xff]
    %v73 = vld [vmem:[%s0 + $0x8] sm:$0xff]
    %v74 = vld [vmem:[%s0 + $0x10] sm:$0xff]
    %v75 = vld [vmem:[%s0 + $0x18] sm:$0xf]
    %v76 = vld [vmem:[#allocation2] sm:$0xff]
    %v77 = vld [vmem:[#allocation2 + $0x8] sm:$0xff]
    %v78 = vld [vmem:[#allocation2 + $0x10] sm:$0xff]
    %v79 = vld [vmem:[#allocation2 + $0x18] sm:$0xff]
    %v80 = vld [vmem:[#allocation2 + $0x20] sm:$0xff]
    %v81 = vld [vmem:[#allocation2 + $0x28] sm:$0xff]
    %v82 = vld [vmem:[#allocation2 + $0x30] sm:$0xff]
    %v83 = vld [vmem:[#allocation2 + $0x38] sm:$0xff]
    %v84 = vld [vmem:[#allocation2 + $0x40] sm:$0xff]
    %v85 = vld [vmem:[#allocation2 + $0x48] sm:$0xff]
    %v86 = vld [vmem:[#allocation2 + $0x50] sm:$0xff]
    %v87 = vld [vmem:[#allocation2 + $0x58] sm:$0xff]
    %v88 = vld [vmem:[#allocation2 + $0x60] sm:$0xff]
    %v89 = vld [vmem:[#allocation2 + $0x68] sm:$0xff]
    %v90 = vld [vmem:[#allocation2 + $0x70] sm:$0xff]
    %v91 = vld [vmem:[#allocation2 + $0x78] sm:$0xff]
    %v92 = vld [vmem:[#allocation2 + $0x80] sm:$0xff]
    %v93 = vld [vmem:[#allocation2 + $0x88] sm:$0xff]
    %v94 = vld [vmem:[#allocation2 + $0x90] sm:$0xff]
    %v95 = vld [vmem:[#allocation2 + $0x98] sm:$0xff]
    %v96 = vld [vmem:[#allocation2 + $0xa0] sm:$0xff]
    %v97 = vld [vmem:[#allocation2 + $0xa8] sm:$0xff]
    %v98 = vld [vmem:[#allocation2 + $0xb0] sm:$0xff]
    %v99 = vld [vmem:[#allocation2 + $0xb8] sm:$0xff]
    %v100 = vld [vmem:[#allocation2 + $0xc0] sm:$0xff]
    %v101 = vld [vmem:[#allocation2 + $0xc8] sm:$0xff]
    %v102 = vld [vmem:[#allocation2 + $0xd0] sm:$0xff]
    %v103 = vld [vmem:[#allocation2 + $0xd8] sm:$0xff]
    %v104 = vld [vmem:[#allocation2 + $0xe0] sm:$0xff]
    %v105 = vld [vmem:[#allocation2 + $0xe8] sm:$0xff]
    %v106 = vld [vmem:[#allocation2 + $0xf0] sm:$0xff]
    %v107 = vld [vmem:[#allocation2 + $0xf8] sm:$0xff]
    %v108 = vld [vmem:[#allocation2 + $0x100] sm:$0xff]
    %v109 = vld [vmem:[#allocation2 + $0x108] sm:$0xff]
    %v110 = vld [vmem:[#allocation2 + $0x110] sm:$0xff]
    %v111 = vld [vmem:[#allocation2 + $0x118] sm:$0xff]
    %v112 = vld [vmem:[#allocation2 + $0x120] sm:$0xff]
    %v113 = vld [vmem:[#allocation2 + $0x128] sm:$0xff]
    %v114 = vld [vmem:[#allocation2 + $0x130] sm:$0xff]
    %v115 = vld [vmem:[#allocation2 + $0x138] sm:$0xff]
    %v116 = vld [vmem:[#allocation2 + $0x140] sm:$0xff]
    %v117 = vld [vmem:[#allocation2 + $0x148] sm:$0xff]
    %v118 = vld [vmem:[#allocation2 + $0x150] sm:$0xff]
    %v119 = vld [vmem:[#allocation2 + $0x158] sm:$0xff]
    %v120 = vld [vmem:[#allocation2 + $0x160] sm:$0xff]
    %v121 = vld [vmem:[#allocation2 + $0x168] sm:$0xff]
    %v122 = vld [vmem:[#allocation2 + $0x170] sm:$0xff]
    %v123 = vld [vmem:[#allocation2 + $0x178] sm:$0xff]
    %v124 = vld [vmem:[#allocation2 + $0x180] sm:$0xff]
    %v125 = vld [vmem:[#allocation2 + $0x188] sm:$0xff]
    %v126 = vld [vmem:[#allocation2 + $0x190] sm:$0xff]
    %v127 = vld [vmem:[#allocation2 + $0x198] sm:$0xff]
    %v128 = vld [vmem:[#allocation2 + $0x1a0] sm:$0xff]
    %v129 = vld [vmem:[#allocation2 + $0x1a8] sm:$0xff]
    %v130 = vld [vmem:[#allocation2 + $0x1b0] sm:$0xff]
    %v131 = vld [vmem:[#allocation2 + $0x1b8] sm:$0xff]
    %v132 = vld [vmem:[#allocation2 + $0x1c0] sm:$0xff]
    %v133 = vld [vmem:[#allocation2 + $0x1c8] sm:$0xff]
    %v134 = vld [vmem:[#allocation2 + $0x1d0] sm:$0xff]
    %v135 = vld [vmem:[#allocation2 + $0x1d8] sm:$0xff]
    %v136 = vld [vmem:[#allocation2 + $0x1e0] sm:$0xff]
    %v137 = vld [vmem:[#allocation2 + $0x1e8] sm:$0xff]
    %v138 = vld [vmem:[#allocation2 + $0x1f0] sm:$0xff]
    %v139 = vld [vmem:[#allocation2 + $0x1f8] sm:$0xff]
    %v140 = vld [vmem:[#allocation2 + $0x200] sm:$0xff]
    %v141 = vld [vmem:[#allocation2 + $0x208] sm:$0xff]
    %v142 = vld [vmem:[#allocation2 + $0x210] sm:$0xff]
    %v143 = vld [vmem:[#allocation2 + $0x218] sm:$0xff]
    %v144 = vld [vmem:[#allocation2 + $0x220] sm:$0xff]
    %v145 = vld [vmem:[#allocation2 + $0x228] sm:$0xff]
    %v146 = vld [vmem:[#allocation2 + $0x230] sm:$0xff]
    %v147 = vld [vmem:[#allocation2 + $0x238] sm:$0xff]
    %v148 = vld [vmem:[#allocation2 + $0x240] sm:$0xff]
    %v149 = vld [vmem:[#allocation2 + $0x248] sm:$0xff]
    %v150 = vld [vmem:[#allocation2 + $0x250] sm:$0xff]
    %v151 = vld [vmem:[#allocation2 + $0x258] sm:$0xff]
    %v152 = vld [vmem:[#allocation2 + $0x260] sm:$0xff]
    %v153 = vld [vmem:[#allocation2 + $0x268] sm:$0xff]
    %v154 = vld [vmem:[#allocation2 + $0x270] sm:$0xff]
    %v155 = vld [vmem:[#allocation2 + $0x278] sm:$0xff]
    %v156 = vld [vmem:[#allocation2 + $0x280] sm:$0xff]
    %v157 = vld [vmem:[#allocation2 + $0x288] sm:$0xff]
    %v158 = vld [vmem:[#allocation2 + $0x290] sm:$0xff]
    %v159 = vld [vmem:[#allocation2 + $0x298] sm:$0xff]
    %v160 = vld [vmem:[#allocation2 + $0x2a0] sm:$0xff]
    %v161 = vld [vmem:[#allocation2 + $0x2a8] sm:$0xff]
    %v162 = vld [vmem:[#allocation2 + $0x2b0] sm:$0xff]
    %v163 = vld [vmem:[#allocation2 + $0x2b8] sm:$0xff]
    %v164 = vld [vmem:[#allocation2 + $0x2c0] sm:$0xff]
    %v165 = vld [vmem:[#allocation2 + $0x2c8] sm:$0xff]
    %v166 = vld [vmem:[#allocation2 + $0x2d0] sm:$0xff]
    %v167 = vld [vmem:[#allocation2 + $0x2d8] sm:$0xff]
    %v168 = vld [vmem:[#allocation2 + $0x2e0] sm:$0xff]
    %v169 = vld [vmem:[#allocation2 + $0x2e8] sm:$0xff]
    %v170 = vld [vmem:[#allocation2 + $0x2f0] sm:$0xff]
    %v171 = vld [vmem:[#allocation2 + $0x2f8] sm:$0xff]
    %v172 = vld [vmem:[#allocation2 + $0x300] sm:$0xff]
    %v173 = vld [vmem:[#allocation2 + $0x308] sm:$0xff]
    %v174 = vld [vmem:[#allocation2 + $0x310] sm:$0xff]
    %v175 = vld [vmem:[#allocation2 + $0x318] sm:$0xff]
    %v176 = vld [vmem:[#allocation2 + $0x320] sm:$0xff]
    %v177 = vld [vmem:[#allocation2 + $0x328] sm:$0xff]
    %v178 = vld [vmem:[#allocation2 + $0x330] sm:$0xff]
    %v179 = vld [vmem:[#allocation2 + $0x338] sm:$0xff]
    %v180 = vld [vmem:[#allocation2 + $0x340] sm:$0xff]
    %v181 = vld [vmem:[#allocation2 + $0x348] sm:$0xff]
    %v182 = vld [vmem:[#allocation2 + $0x350] sm:$0xff]
    %v183 = vld [vmem:[#allocation2 + $0x358] sm:$0xff]
    %v184 = vld [vmem:[#allocation2 + $0x360] sm:$0xff]
    %v185 = vld [vmem:[#allocation2 + $0x368] sm:$0xff]
    %v186 = vld [vmem:[#allocation2 + $0x370] sm:$0xff]
    %v187 = vld [vmem:[#allocation2 + $0x378] sm:$0xff]
    %v188 = vld [vmem:[#allocation2 + $0x380] sm:$0xff]
    %v189 = vld [vmem:[#allocation2 + $0x388] sm:$0xff]
    %v190 = vld [vmem:[#allocation2 + $0x390] sm:$0xff]
    %v191 = vld [vmem:[#allocation2 + $0x398] sm:$0xff]
    %v192 = vld [vmem:[#allocation2 + $0x3a0] sm:$0xff]
    %v193 = vld [vmem:[#allocation2 + $0x3a8] sm:$0xff]
    %v194 = vld [vmem:[#allocation2 + $0x3b0] sm:$0xff]
    %v195 = vld [vmem:[#allocation2 + $0x3b8] sm:$0xff]
    %v196 = vld [vmem:[#allocation2 + $0x3c0] sm:$0xff]
    %v197 = vld [vmem:[#allocation2 + $0x3c8] sm:$0xff]
    %v198 = vld [vmem:[#allocation2 + $0x3d0] sm:$0xff]
    %v199 = vld [vmem:[#allocation2 + $0x3d8] sm:$0xff]
    %v200 = vld [vmem:[#allocation2 + $0x3e0] sm:$0xff]
    %v201 = vld [vmem:[#allocation2 + $0x3e8] sm:$0xff]
    %v202 = vld [vmem:[#allocation2 + $0x3f0] sm:$0xff]
    %v203 = vld [vmem:[#allocation2 + $0x3f8] sm:$0xff]
    %v204 = vld [vmem:[#allocation2 + $0x400] sm:$0xff]
    %v205 = vld [vmem:[#allocation2 + $0x408] sm:$0xff]
    %v206 = vld [vmem:[#allocation2 + $0x410] sm:$0xff]
    %v207 = vld [vmem:[#allocation2 + $0x418] sm:$0xff]
    %v208 = vld [vmem:[#allocation2 + $0x420] sm:$0xff]
    %v209 = vld [vmem:[#allocation2 + $0x428] sm:$0xff]
    %v210 = vld [vmem:[#allocation2 + $0x430] sm:$0xff]
    %v211 = vld [vmem:[#allocation2 + $0x438] sm:$0xff]
    %v212 = vld [vmem:[#allocation2 + $0x440] sm:$0xff]
    %v213 = vld [vmem:[#allocation2 + $0x448] sm:$0xff]
    %v214 = vld [vmem:[#allocation2 + $0x450] sm:$0xff]
    %v215 = vld [vmem:[#allocation2 + $0x458] sm:$0xff]
    %v216 = vld [vmem:[#allocation2 + $0x460] sm:$0xff]
    %v217 = vld [vmem:[#allocation2 + $0x468] sm:$0xff]
    %v218 = vld [vmem:[#allocation2 + $0x470] sm:$0xff]
    %v219 = vld [vmem:[#allocation2 + $0x478] sm:$0xff]
    %v220 = vld [vmem:[#allocation2 + $0x480] sm:$0xff]
    %v221 = vld [vmem:[#allocation2 + $0x488] sm:$0xff]
    %v222 = vld [vmem:[#allocation2 + $0x490] sm:$0xff]
    %v223 = vld [vmem:[#allocation2 + $0x498] sm:$0xff]
    %v224 = vld [vmem:[#allocation2 + $0x4a0] sm:$0xff]
    %v225 = vld [vmem:[#allocation2 + $0x4a8] sm:$0xff]
    %v226 = vld [vmem:[#allocation2 + $0x4b0] sm:$0xff]
    %v227 = vld [vmem:[#allocation2 + $0x4b8] sm:$0xff]
    %v228 = vld [vmem:[#allocation2 + $0x4c0] sm:$0xff]
    %v229 = vld [vmem:[#allocation2 + $0x4c8] sm:$0xff]
    %v230 = vld [vmem:[#allocation2 + $0x4d0] sm:$0xff]
    %v231 = vld [vmem:[#allocation2 + $0x4d8] sm:$0xff]
    %v232 = vld [vmem:[#allocation2 + $0x4e0] sm:$0xff]
    %v233 = vld [vmem:[#allocation2 + $0x4e8] sm:$0xff]
    %v234 = vld [vmem:[#allocation2 + $0x4f0] sm:$0xff]
    %v235 = vld [vmem:[#allocation2 + $0x4f8] sm:$0xff]
    %v236 = vld [vmem:[#allocation2 + $0x500] sm:$0xff]
    %v237 = vld [vmem:[#allocation2 + $0x508] sm:$0xff]
    %v238 = vld [vmem:[#allocation2 + $0x510] sm:$0xff]
    %v239 = vld [vmem:[#allocation2 + $0x518] sm:$0xff]
    %v240 = vld [vmem:[#allocation2 + $0x520] sm:$0xff]
    %v241 = vld [vmem:[#allocation2 + $0x528] sm:$0xff]
    %v242 = vld [vmem:[#allocation2 + $0x530] sm:$0xff]
    %v243 = vld [vmem:[#allocation2 + $0x538] sm:$0xff]
    %v244 = vld [vmem:[#allocation2 + $0x540] sm:$0xff]
    %v245 = vld [vmem:[#allocation2 + $0x548] sm:$0xff]
    %v246 = vld [vmem:[#allocation2 + $0x550] sm:$0xff]
    %v247 = vld [vmem:[#allocation2 + $0x558] sm:$0xff]
    %v248 = vld [vmem:[#allocation2 + $0x560] sm:$0xff]
    %v249 = vld [vmem:[#allocation2 + $0x568] sm:$0xff]
    %v250 = vld [vmem:[#allocation2 + $0x570] sm:$0xff]
    %v251 = vld [vmem:[#allocation2 + $0x578] sm:$0xff]
    %v252 = vld [vmem:[#allocation2 + $0x580] sm:$0xff]
    %v253 = vld [vmem:[#allocation2 + $0x588] sm:$0xff]
    %v254 = vld [vmem:[#allocation2 + $0x590] sm:$0xff]
    %v255 = vld [vmem:[#allocation2 + $0x598] sm:$0xff]
    %v256 = vld [vmem:[#allocation2 + $0x5a0] sm:$0xff]
    %v257 = vld [vmem:[#allocation2 + $0x5a8] sm:$0xff]
    %v258 = vld [vmem:[#allocation2 + $0x5b0] sm:$0xff]
    %v259 = vld [vmem:[#allocation2 + $0x5b8] sm:$0xff]
    %v260 = vld [vmem:[#allocation2 + $0x5c0] sm:$0xff]
    %v261 = vld [vmem:[#allocation2 + $0x5c8] sm:$0xff]
    %v262 = vld [vmem:[#allocation2 + $0x5d0] sm:$0xff]
    %v263 = vld [vmem:[#allocation2 + $0x5d8] sm:$0xff]
    %v264 = vld [vmem:[#allocation2 + $0x5e0] sm:$0xff]
    %v265 = vld [vmem:[#allocation2 + $0x5e8] sm:$0xff]
    %v266 = vld [vmem:[#allocation2 + $0x5f0] sm:$0xff]
    %v267 = vld [vmem:[#allocation2 + $0x5f8] sm:$0xff]
    %v268 = vld [vmem:[#allocation2 + $0x600] sm:$0xff]
    %v269 = vld [vmem:[#allocation2 + $0x608] sm:$0xff]
    %v270 = vld [vmem:[#allocation2 + $0x610] sm:$0xff]
    %v271 = vld [vmem:[#allocation2 + $0x618] sm:$0xff]
    %v272 = vld [vmem:[%s2] sm:$0xf]
    %v274 = vperm.slane %v272, 0
    %v275 = vperm.slane %v272, 1
    %v276 = vperm.slane %v272, 2
    %v277 = vperm.slane %v272, 3
    %v286 = vunpack.c.l.b16 %v72
    %v287 = vunpack.c.h.b16 %v72
    %v288 = vunpack.c.l.b16 %v73
    %v289 = vunpack.c.h.b16 %v73
    %v290 = vunpack.c.l.b16 %v74
    %v291 = vunpack.c.h.b16 %v74
    %v292 = vunpack.c.l.b16 %v75
    %v293 = vpack.c.b16 %v286, %v286
    %v294 = vpack.c.b16 %v287, %v287
    %v295 = vpack.c.b16 %v288, %v288
    %v296 = vpack.c.b16 %v289, %v289
    %v297 = vpack.c.b16 %v290, %v290
    %v298 = vpack.c.b16 %v291, %v291
    %v299 = vpack.c.b16 %v292, %v292
    %v502 = vunpack.c.l.b16 %v76
    %v503 = vunpack.c.h.b16 %v76
    %v504 = vunpack.c.l.b16 %v77
    %v505 = vunpack.c.h.b16 %v77
    %v506 = vunpack.c.l.b16 %v78
    %v507 = vunpack.c.h.b16 %v78
    %v508 = vunpack.c.l.b16 %v79
    %v509 = vunpack.c.h.b16 %v79
    %v510 = vunpack.c.l.b16 %v80
    %v511 = vunpack.c.h.b16 %v80
    %v512 = vunpack.c.l.b16 %v81
    %v513 = vunpack.c.h.b16 %v81
    %v514 = vunpack.c.l.b16 %v82
    %v515 = vunpack.c.h.b16 %v82
    %v516 = vunpack.c.l.b16 %v83
    %v517 = vunpack.c.h.b16 %v83
    %v518 = vunpack.c.l.b16 %v84
    %v519 = vunpack.c.h.b16 %v84
    %v520 = vunpack.c.l.b16 %v85
    %v521 = vunpack.c.h.b16 %v85
    %v522 = vunpack.c.l.b16 %v86
    %v523 = vunpack.c.h.b16 %v86
    %v524 = vunpack.c.l.b16 %v87
    %v525 = vunpack.c.h.b16 %v87
    %v526 = vunpack.c.l.b16 %v88
    %v527 = vunpack.c.h.b16 %v88
    %v528 = vunpack.c.l.b16 %v89
    %v529 = vunpack.c.h.b16 %v89
    %v530 = vunpack.c.l.b16 %v90
    %v531 = vunpack.c.h.b16 %v90
    %v532 = vunpack.c.l.b16 %v91
    %v533 = vunpack.c.h.b16 %v91
    %v534 = vunpack.c.l.b16 %v92
    %v535 = vunpack.c.h.b16 %v92
    %v536 = vunpack.c.l.b16 %v93
    %v537 = vunpack.c.h.b16 %v93
    %v538 = vunpack.c.l.b16 %v94
    %v539 = vunpack.c.h.b16 %v94
    %v540 = vunpack.c.l.b16 %v95
    %v541 = vunpack.c.h.b16 %v95
    %v542 = vunpack.c.l.b16 %v96
    %v543 = vunpack.c.h.b16 %v96
    %v544 = vunpack.c.l.b16 %v97
    %v545 = vunpack.c.h.b16 %v97
    %v546 = vunpack.c.l.b16 %v98
    %v547 = vunpack.c.h.b16 %v98
    %v548 = vunpack.c.l.b16 %v99
    %v549 = vunpack.c.h.b16 %v99
    %v550 = vunpack.c.l.b16 %v100
    %v551 = vunpack.c.h.b16 %v100
    %v552 = vunpack.c.l.b16 %v101
    %v553 = vunpack.c.h.b16 %v101
    %v554 = vunpack.c.l.b16 %v102
    %v555 = vunpack.c.h.b16 %v102
    %v556 = vunpack.c.l.b16 %v103
    %v557 = vunpack.c.h.b16 %v103
    %v558 = vunpack.c.l.b16 %v104
    %v559 = vunpack.c.h.b16 %v104
    %v560 = vunpack.c.l.b16 %v105
    %v561 = vunpack.c.h.b16 %v105
    %v562 = vunpack.c.l.b16 %v106
    %v563 = vunpack.c.h.b16 %v106
    %v564 = vunpack.c.l.b16 %v107
    %v565 = vunpack.c.h.b16 %v107
    %v566 = vunpack.c.l.b16 %v108
    %v567 = vunpack.c.h.b16 %v108
    %v568 = vunpack.c.l.b16 %v109
    %v569 = vunpack.c.h.b16 %v109
    %v570 = vunpack.c.l.b16 %v110
    %v571 = vunpack.c.h.b16 %v110
    %v572 = vunpack.c.l.b16 %v111
    %v573 = vunpack.c.h.b16 %v111
    %v574 = vunpack.c.l.b16 %v112
    %v575 = vunpack.c.h.b16 %v112
    %v576 = vunpack.c.l.b16 %v113
    %v577 = vunpack.c.h.b16 %v113
    %v578 = vunpack.c.l.b16 %v114
    %v579 = vunpack.c.h.b16 %v114
    %v580 = vunpack.c.l.b16 %v115
    %v581 = vunpack.c.h.b16 %v115
    %v582 = vunpack.c.l.b16 %v116
    %v583 = vunpack.c.h.b16 %v116
    %v584 = vunpack.c.l.b16 %v117
    %v585 = vunpack.c.h.b16 %v117
    %v586 = vunpack.c.l.b16 %v118
    %v587 = vunpack.c.h.b16 %v118
    %v588 = vunpack.c.l.b16 %v119
    %v589 = vunpack.c.h.b16 %v119
    %v590 = vunpack.c.l.b16 %v120
    %v591 = vunpack.c.h.b16 %v120
    %v592 = vunpack.c.l.b16 %v121
    %v593 = vunpack.c.h.b16 %v121
    %v594 = vunpack.c.l.b16 %v122
    %v595 = vunpack.c.h.b16 %v122
    %v596 = vunpack.c.l.b16 %v123
    %v597 = vunpack.c.h.b16 %v123
    %v598 = vunpack.c.l.b16 %v124
    %v599 = vunpack.c.h.b16 %v124
    %v600 = vunpack.c.l.b16 %v125
    %v601 = vunpack.c.h.b16 %v125
    %v602 = vunpack.c.l.b16 %v126
    %v603 = vunpack.c.h.b16 %v126
    %v604 = vunpack.c.l.b16 %v127
    %v605 = vunpack.c.h.b16 %v127
    %v606 = vunpack.c.l.b16 %v128
    %v607 = vunpack.c.h.b16 %v128
    %v608 = vunpack.c.l.b16 %v129
    %v609 = vunpack.c.h.b16 %v129
    %v610 = vunpack.c.l.b16 %v130
    %v611 = vunpack.c.h.b16 %v130
    %v612 = vunpack.c.l.b16 %v131
    %v613 = vunpack.c.h.b16 %v131
    %v614 = vunpack.c.l.b16 %v132
    %v615 = vunpack.c.h.b16 %v132
    %v616 = vunpack.c.l.b16 %v133
    %v617 = vunpack.c.h.b16 %v133
    %v618 = vunpack.c.l.b16 %v134
    %v619 = vunpack.c.h.b16 %v134
    %v620 = vunpack.c.l.b16 %v135
    %v621 = vunpack.c.h.b16 %v135
    %v622 = vunpack.c.l.b16 %v136
    %v623 = vunpack.c.h.b16 %v136
    %v624 = vunpack.c.l.b16 %v137
    %v625 = vunpack.c.h.b16 %v137
    %v626 = vunpack.c.l.b16 %v138
    %v627 = vunpack.c.h.b16 %v138
    %v628 = vunpack.c.l.b16 %v139
    %v629 = vunpack.c.h.b16 %v139
    %v630 = vunpack.c.l.b16 %v140
    %v631 = vunpack.c.h.b16 %v140
    %v632 = vunpack.c.l.b16 %v141
    %v633 = vunpack.c.h.b16 %v141
    %v634 = vunpack.c.l.b16 %v142
    %v635 = vunpack.c.h.b16 %v142
    %v636 = vunpack.c.l.b16 %v143
    %v637 = vunpack.c.h.b16 %v143
    %v638 = vunpack.c.l.b16 %v144
    %v639 = vunpack.c.h.b16 %v144
    %v640 = vunpack.c.l.b16 %v145
    %v641 = vunpack.c.h.b16 %v145
    %v642 = vunpack.c.l.b16 %v146
    %v643 = vunpack.c.h.b16 %v146
    %v644 = vunpack.c.l.b16 %v147
    %v645 = vunpack.c.h.b16 %v147
    %v646 = vunpack.c.l.b16 %v148
    %v647 = vunpack.c.h.b16 %v148
    %v648 = vunpack.c.l.b16 %v149
    %v649 = vunpack.c.h.b16 %v149
    %v650 = vunpack.c.l.b16 %v150
    %v651 = vunpack.c.h.b16 %v150
    %v652 = vunpack.c.l.b16 %v151
    %v653 = vunpack.c.h.b16 %v151
    %v654 = vunpack.c.l.b16 %v152
    %v655 = vunpack.c.h.b16 %v152
    %v656 = vunpack.c.l.b16 %v153
    %v657 = vunpack.c.h.b16 %v153
    %v658 = vunpack.c.l.b16 %v154
    %v659 = vunpack.c.h.b16 %v154
    %v660 = vunpack.c.l.b16 %v155
    %v661 = vunpack.c.h.b16 %v155
    %v662 = vunpack.c.l.b16 %v156
    %v663 = vunpack.c.h.b16 %v156
    %v664 = vunpack.c.l.b16 %v157
    %v665 = vunpack.c.h.b16 %v157
    %v666 = vunpack.c.l.b16 %v158
    %v667 = vunpack.c.h.b16 %v158
    %v668 = vunpack.c.l.b16 %v159
    %v669 = vunpack.c.h.b16 %v159
    %v670 = vunpack.c.l.b16 %v160
    %v671 = vunpack.c.h.b16 %v160
    %v672 = vunpack.c.l.b16 %v161
    %v673 = vunpack.c.h.b16 %v161
    %v674 = vunpack.c.l.b16 %v162
    %v675 = vunpack.c.h.b16 %v162
    %v676 = vunpack.c.l.b16 %v163
    %v677 = vunpack.c.h.b16 %v163
    %v678 = vunpack.c.l.b16 %v164
    %v679 = vunpack.c.h.b16 %v164
    %v680 = vunpack.c.l.b16 %v165
    %v681 = vunpack.c.h.b16 %v165
    %v682 = vunpack.c.l.b16 %v166
    %v683 = vunpack.c.h.b16 %v166
    %v684 = vunpack.c.l.b16 %v167
    %v685 = vunpack.c.h.b16 %v167
    %v686 = vunpack.c.l.b16 %v168
    %v687 = vunpack.c.h.b16 %v168
    %v688 = vunpack.c.l.b16 %v169
    %v689 = vunpack.c.h.b16 %v169
    %v690 = vunpack.c.l.b16 %v170
    %v691 = vunpack.c.h.b16 %v170
    %v692 = vunpack.c.l.b16 %v171
    %v693 = vunpack.c.h.b16 %v171
    %v694 = vunpack.c.l.b16 %v172
    %v695 = vunpack.c.h.b16 %v172
    %v696 = vunpack.c.l.b16 %v173
    %v697 = vunpack.c.h.b16 %v173
    %v698 = vunpack.c.l.b16 %v174
    %v699 = vunpack.c.h.b16 %v174
    %v700 = vunpack.c.l.b16 %v175
    %v701 = vunpack.c.h.b16 %v175
    %v702 = vunpack.c.l.b16 %v176
    %v703 = vunpack.c.h.b16 %v176
    %v704 = vunpack.c.l.b16 %v177
    %v705 = vunpack.c.h.b16 %v177
    %v706 = vunpack.c.l.b16 %v178
    %v707 = vunpack.c.h.b16 %v178
    %v708 = vunpack.c.l.b16 %v179
    %v709 = vunpack.c.h.b16 %v179
    %v710 = vunpack.c.l.b16 %v180
    %v711 = vunpack.c.h.b16 %v180
    %v712 = vunpack.c.l.b16 %v181
    %v713 = vunpack.c.h.b16 %v181
    %v714 = vunpack.c.l.b16 %v182
    %v715 = vunpack.c.h.b16 %v182
    %v716 = vunpack.c.l.b16 %v183
    %v717 = vunpack.c.h.b16 %v183
    %v718 = vunpack.c.l.b16 %v184
    %v719 = vunpack.c.h.b16 %v184
    %v720 = vunpack.c.l.b16 %v185
    %v721 = vunpack.c.h.b16 %v185
    %v722 = vunpack.c.l.b16 %v186
    %v723 = vunpack.c.h.b16 %v186
    %v724 = vunpack.c.l.b16 %v187
    %v725 = vunpack.c.h.b16 %v187
    %v726 = vunpack.c.l.b16 %v188
    %v727 = vunpack.c.h.b16 %v188
    %v728 = vunpack.c.l.b16 %v189
    %v729 = vunpack.c.h.b16 %v189
    %v730 = vunpack.c.l.b16 %v190
    %v731 = vunpack.c.h.b16 %v190
    %v732 = vunpack.c.l.b16 %v191
    %v733 = vunpack.c.h.b16 %v191
    %v734 = vunpack.c.l.b16 %v192
    %v735 = vunpack.c.h.b16 %v192
    %v736 = vunpack.c.l.b16 %v193
    %v737 = vunpack.c.h.b16 %v193
    %v738 = vunpack.c.l.b16 %v194
    %v739 = vunpack.c.h.b16 %v194
    %v740 = vunpack.c.l.b16 %v195
    %v741 = vunpack.c.h.b16 %v195
    %v742 = vunpack.c.l.b16 %v196
    %v743 = vunpack.c.h.b16 %v196
    %v744 = vunpack.c.l.b16 %v197
    %v745 = vunpack.c.h.b16 %v197
    %v746 = vunpack.c.l.b16 %v198
    %v747 = vunpack.c.h.b16 %v198
    %v748 = vunpack.c.l.b16 %v199
    %v749 = vunpack.c.h.b16 %v199
    %v750 = vunpack.c.l.b16 %v200
    %v751 = vunpack.c.h.b16 %v200
    %v752 = vunpack.c.l.b16 %v201
    %v753 = vunpack.c.h.b16 %v201
    %v754 = vunpack.c.l.b16 %v202
    %v755 = vunpack.c.h.b16 %v202
    %v756 = vunpack.c.l.b16 %v203
    %v757 = vunpack.c.h.b16 %v203
    %v758 = vunpack.c.l.b16 %v204
    %v759 = vunpack.c.h.b16 %v204
    %v760 = vunpack.c.l.b16 %v205
    %v761 = vunpack.c.h.b16 %v205
    %v762 = vunpack.c.l.b16 %v206
    %v763 = vunpack.c.h.b16 %v206
    %v764 = vunpack.c.l.b16 %v207
    %v765 = vunpack.c.h.b16 %v207
    %v766 = vunpack.c.l.b16 %v208
    %v767 = vunpack.c.h.b16 %v208
    %v768 = vunpack.c.l.b16 %v209
    %v769 = vunpack.c.h.b16 %v209
    %v770 = vunpack.c.l.b16 %v210
    %v771 = vunpack.c.h.b16 %v210
    %v772 = vunpack.c.l.b16 %v211
    %v773 = vunpack.c.h.b16 %v211
    %v774 = vunpack.c.l.b16 %v212
    %v775 = vunpack.c.h.b16 %v212
    %v776 = vunpack.c.l.b16 %v213
    %v777 = vunpack.c.h.b16 %v213
    %v778 = vunpack.c.l.b16 %v214
    %v779 = vunpack.c.h.b16 %v214
    %v780 = vunpack.c.l.b16 %v215
    %v781 = vunpack.c.h.b16 %v215
    %v782 = vunpack.c.l.b16 %v216
    %v783 = vunpack.c.h.b16 %v216
    %v784 = vunpack.c.l.b16 %v217
    %v785 = vunpack.c.h.b16 %v217
    %v786 = vunpack.c.l.b16 %v218
    %v787 = vunpack.c.h.b16 %v218
    %v788 = vunpack.c.l.b16 %v219
    %v789 = vunpack.c.h.b16 %v219
    %v790 = vunpack.c.l.b16 %v220
    %v791 = vunpack.c.h.b16 %v220
    %v792 = vunpack.c.l.b16 %v221
    %v793 = vunpack.c.h.b16 %v221
    %v794 = vunpack.c.l.b16 %v222
    %v795 = vunpack.c.h.b16 %v222
    %v796 = vunpack.c.l.b16 %v223
    %v797 = vunpack.c.h.b16 %v223
    %v798 = vunpack.c.l.b16 %v224
    %v799 = vunpack.c.h.b16 %v224
    %v800 = vunpack.c.l.b16 %v225
    %v801 = vunpack.c.h.b16 %v225
    %v802 = vunpack.c.l.b16 %v226
    %v803 = vunpack.c.h.b16 %v226
    %v804 = vunpack.c.l.b16 %v227
    %v805 = vunpack.c.h.b16 %v227
    %v806 = vunpack.c.l.b16 %v228
    %v807 = vunpack.c.h.b16 %v228
    %v808 = vunpack.c.l.b16 %v229
    %v809 = vunpack.c.h.b16 %v229
    %v810 = vunpack.c.l.b16 %v230
    %v811 = vunpack.c.h.b16 %v230
    %v812 = vunpack.c.l.b16 %v231
    %v813 = vunpack.c.h.b16 %v231
    %v814 = vunpack.c.l.b16 %v232
    %v815 = vunpack.c.h.b16 %v232
    %v816 = vunpack.c.l.b16 %v233
    %v817 = vunpack.c.h.b16 %v233
    %v818 = vunpack.c.l.b16 %v234
    %v819 = vunpack.c.h.b16 %v234
    %v820 = vunpack.c.l.b16 %v235
    %v821 = vunpack.c.h.b16 %v235
    %v822 = vunpack.c.l.b16 %v236
    %v823 = vunpack.c.h.b16 %v236
    %v824 = vunpack.c.l.b16 %v237
    %v825 = vunpack.c.h.b16 %v237
    %v826 = vunpack.c.l.b16 %v238
    %v827 = vunpack.c.h.b16 %v238
    %v828 = vunpack.c.l.b16 %v239
    %v829 = vunpack.c.h.b16 %v239
    %v830 = vunpack.c.l.b16 %v240
    %v831 = vunpack.c.h.b16 %v240
    %v832 = vunpack.c.l.b16 %v241
    %v833 = vunpack.c.h.b16 %v241
    %v834 = vunpack.c.l.b16 %v242
    %v835 = vunpack.c.h.b16 %v242
    %v836 = vunpack.c.l.b16 %v243
    %v837 = vunpack.c.h.b16 %v243
    %v838 = vunpack.c.l.b16 %v244
    %v839 = vunpack.c.h.b16 %v244
    %v840 = vunpack.c.l.b16 %v245
    %v841 = vunpack.c.h.b16 %v245
    %v842 = vunpack.c.l.b16 %v246
    %v843 = vunpack.c.h.b16 %v246
    %v844 = vunpack.c.l.b16 %v247
    %v845 = vunpack.c.h.b16 %v247
    %v846 = vunpack.c.l.b16 %v248
    %v847 = vunpack.c.h.b16 %v248
    %v848 = vunpack.c.l.b16 %v249
    %v849 = vunpack.c.h.b16 %v249
    %v850 = vunpack.c.l.b16 %v250
    %v851 = vunpack.c.h.b16 %v250
    %v852 = vunpack.c.l.b16 %v251
    %v853 = vunpack.c.h.b16 %v251
    %v854 = vunpack.c.l.b16 %v252
    %v855 = vunpack.c.h.b16 %v252
    %v856 = vunpack.c.l.b16 %v253
    %v857 = vunpack.c.h.b16 %v253
    %v858 = vunpack.c.l.b16 %v254
    %v859 = vunpack.c.h.b16 %v254
    %v860 = vunpack.c.l.b16 %v255
    %v861 = vunpack.c.h.b16 %v255
    %v862 = vunpack.c.l.b16 %v256
    %v863 = vunpack.c.h.b16 %v256
    %v864 = vunpack.c.l.b16 %v257
    %v865 = vunpack.c.h.b16 %v257
    %v866 = vunpack.c.l.b16 %v258
    %v867 = vunpack.c.h.b16 %v258
    %v868 = vunpack.c.l.b16 %v259
    %v869 = vunpack.c.h.b16 %v259
    %v870 = vunpack.c.l.b16 %v260
    %v871 = vunpack.c.h.b16 %v260
    %v872 = vunpack.c.l.b16 %v261
    %v873 = vunpack.c.h.b16 %v261
    %v874 = vunpack.c.l.b16 %v262
    %v875 = vunpack.c.h.b16 %v262
    %v876 = vunpack.c.l.b16 %v263
    %v877 = vunpack.c.h.b16 %v263
    %v878 = vunpack.c.l.b16 %v264
    %v879 = vunpack.c.h.b16 %v264
    %v880 = vunpack.c.l.b16 %v265
    %v881 = vunpack.c.h.b16 %v265
    %v882 = vunpack.c.l.b16 %v266
    %v883 = vunpack.c.h.b16 %v266
    %v884 = vunpack.c.l.b16 %v267
    %v885 = vunpack.c.h.b16 %v267
    %v886 = vunpack.c.l.b16 %v268
    %v887 = vunpack.c.h.b16 %v268
    %v888 = vunpack.c.l.b16 %v269
    %v889 = vunpack.c.h.b16 %v269
    %v890 = vunpack.c.l.b16 %v270
    %v891 = vunpack.c.h.b16 %v270
    %v892 = vunpack.c.l.b16 %v271
    %v893 = vunpack.c.h.b16 %v271
    %v894 = vpack.c.b16 %v506, %v502
    %v895 = vpack.c.b16 %v507, %v503
    %v896 = vpack.c.b16 %v508, %v504
    %v897 = vpack.c.b16 %v509, %v505
    %v898 = vpack.c.b16 %v514, %v510
    %v899 = vpack.c.b16 %v515, %v511
    %v900 = vpack.c.b16 %v516, %v512
    %v901 = vpack.c.b16 %v517, %v513
    %v902 = vpack.c.b16 %v522, %v518
    %v903 = vpack.c.b16 %v523, %v519
    %v904 = vpack.c.b16 %v524, %v520
    %v905 = vpack.c.b16 %v525, %v521
    %v906 = vpack.c.b16 %v530, %v526
    %v907 = vpack.c.b16 %v531, %v527
    %v908 = vpack.c.b16 %v532, %v528
    %v909 = vpack.c.b16 %v533, %v529
    %v910 = vpack.c.b16 %v538, %v534
    %v911 = vpack.c.b16 %v539, %v535
    %v912 = vpack.c.b16 %v540, %v536
    %v913 = vpack.c.b16 %v541, %v537
    %v914 = vpack.c.b16 %v546, %v542
    %v915 = vpack.c.b16 %v547, %v543
    %v916 = vpack.c.b16 %v548, %v544
    %v917 = vpack.c.b16 %v549, %v545
    %v918 = vpack.c.b16 %v554, %v550
    %v919 = vpack.c.b16 %v555, %v551
    %v920 = vpack.c.b16 %v556, %v552
    %v921 = vpack.c.b16 %v557, %v553
    %v922 = vpack.c.b16 %v562, %v558
    %v923 = vpack.c.b16 %v563, %v559
    %v924 = vpack.c.b16 %v564, %v560
    %v925 = vpack.c.b16 %v565, %v561
    %v926 = vpack.c.b16 %v570, %v566
    %v927 = vpack.c.b16 %v571, %v567
    %v928 = vpack.c.b16 %v572, %v568
    %v929 = vpack.c.b16 %v573, %v569
    %v930 = vpack.c.b16 %v578, %v574
    %v931 = vpack.c.b16 %v579, %v575
    %v932 = vpack.c.b16 %v580, %v576
    %v933 = vpack.c.b16 %v581, %v577
    %v934 = vpack.c.b16 %v586, %v582
    %v935 = vpack.c.b16 %v587, %v583
    %v936 = vpack.c.b16 %v588, %v584
    %v937 = vpack.c.b16 %v589, %v585
    %v938 = vpack.c.b16 %v594, %v590
    %v939 = vpack.c.b16 %v595, %v591
    %v940 = vpack.c.b16 %v596, %v592
    %v941 = vpack.c.b16 %v597, %v593
    %v942 = vpack.c.b16 %v602, %v598
    %v943 = vpack.c.b16 %v603, %v599
    %v944 = vpack.c.b16 %v604, %v600
    %v945 = vpack.c.b16 %v605, %v601
    %v946 = vpack.c.b16 %v610, %v606
    %v947 = vpack.c.b16 %v611, %v607
    %v948 = vpack.c.b16 %v612, %v608
    %v949 = vpack.c.b16 %v613, %v609
    %v950 = vpack.c.b16 %v618, %v614
    %v951 = vpack.c.b16 %v619, %v615
    %v952 = vpack.c.b16 %v620, %v616
    %v953 = vpack.c.b16 %v621, %v617
    %v954 = vpack.c.b16 %v626, %v622
    %v955 = vpack.c.b16 %v627, %v623
    %v956 = vpack.c.b16 %v628, %v624
    %v957 = vpack.c.b16 %v629, %v625
    %v958 = vpack.c.b16 %v634, %v630
    %v959 = vpack.c.b16 %v635, %v631
    %v960 = vpack.c.b16 %v636, %v632
    %v961 = vpack.c.b16 %v637, %v633
    %v962 = vpack.c.b16 %v642, %v638
    %v963 = vpack.c.b16 %v643, %v639
    %v964 = vpack.c.b16 %v644, %v640
    %v965 = vpack.c.b16 %v645, %v641
    %v966 = vpack.c.b16 %v650, %v646
    %v967 = vpack.c.b16 %v651, %v647
    %v968 = vpack.c.b16 %v652, %v648
    %v969 = vpack.c.b16 %v653, %v649
    %v970 = vpack.c.b16 %v658, %v654
    %v971 = vpack.c.b16 %v659, %v655
    %v972 = vpack.c.b16 %v660, %v656
    %v973 = vpack.c.b16 %v661, %v657
    %v974 = vpack.c.b16 %v666, %v662
    %v975 = vpack.c.b16 %v667, %v663
    %v976 = vpack.c.b16 %v668, %v664
    %v977 = vpack.c.b16 %v669, %v665
    %v978 = vpack.c.b16 %v674, %v670
    %v979 = vpack.c.b16 %v675, %v671
    %v980 = vpack.c.b16 %v676, %v672
    %v981 = vpack.c.b16 %v677, %v673
    %v982 = vpack.c.b16 %v682, %v678
    %v983 = vpack.c.b16 %v683, %v679
    %v984 = vpack.c.b16 %v684, %v680
    %v985 = vpack.c.b16 %v685, %v681
    %v986 = vpack.c.b16 %v690, %v686
    %v987 = vpack.c.b16 %v691, %v687
    %v988 = vpack.c.b16 %v692, %v688
    %v989 = vpack.c.b16 %v693, %v689
    %v990 = vpack.c.b16 %v698, %v694
    %v991 = vpack.c.b16 %v699, %v695
    %v992 = vpack.c.b16 %v700, %v696
    %v993 = vpack.c.b16 %v701, %v697
    %v994 = vpack.c.b16 %v706, %v702
    %v995 = vpack.c.b16 %v707, %v703
    %v996 = vpack.c.b16 %v708, %v704
    %v997 = vpack.c.b16 %v709, %v705
    %v998 = vpack.c.b16 %v714, %v710
    %v999 = vpack.c.b16 %v715, %v711
    %v1000 = vpack.c.b16 %v716, %v712
    %v1001 = vpack.c.b16 %v717, %v713
    %v1002 = vpack.c.b16 %v722, %v718
    %v1003 = vpack.c.b16 %v723, %v719
    %v1004 = vpack.c.b16 %v724, %v720
    %v1005 = vpack.c.b16 %v725, %v721
    %v1006 = vpack.c.b16 %v730, %v726
    %v1007 = vpack.c.b16 %v731, %v727
    %v1008 = vpack.c.b16 %v732, %v728
    %v1009 = vpack.c.b16 %v733, %v729
    %v1010 = vpack.c.b16 %v738, %v734
    %v1011 = vpack.c.b16 %v739, %v735
    %v1012 = vpack.c.b16 %v740, %v736
    %v1013 = vpack.c.b16 %v741, %v737
    %v1014 = vpack.c.b16 %v746, %v742
    %v1015 = vpack.c.b16 %v747, %v743
    %v1016 = vpack.c.b16 %v748, %v744
    %v1017 = vpack.c.b16 %v749, %v745
    %v1018 = vpack.c.b16 %v754, %v750
    %v1019 = vpack.c.b16 %v755, %v751
    %v1020 = vpack.c.b16 %v756, %v752
    %v1021 = vpack.c.b16 %v757, %v753
    %v1022 = vpack.c.b16 %v762, %v758
    %v1023 = vpack.c.b16 %v763, %v759
    %v1024 = vpack.c.b16 %v764, %v760
    %v1025 = vpack.c.b16 %v765, %v761
    %v1026 = vpack.c.b16 %v770, %v766
    %v1027 = vpack.c.b16 %v771, %v767
    %v1028 = vpack.c.b16 %v772, %v768
    %v1029 = vpack.c.b16 %v773, %v769
    %v1030 = vpack.c.b16 %v778, %v774
    %v1031 = vpack.c.b16 %v779, %v775
    %v1032 = vpack.c.b16 %v780, %v776
    %v1033 = vpack.c.b16 %v781, %v777
    %v1034 = vpack.c.b16 %v786, %v782
    %v1035 = vpack.c.b16 %v787, %v783
    %v1036 = vpack.c.b16 %v788, %v784
    %v1037 = vpack.c.b16 %v789, %v785
    %v1038 = vpack.c.b16 %v794, %v790
    %v1039 = vpack.c.b16 %v795, %v791
    %v1040 = vpack.c.b16 %v796, %v792
    %v1041 = vpack.c.b16 %v797, %v793
    %v1042 = vpack.c.b16 %v802, %v798
    %v1043 = vpack.c.b16 %v803, %v799
    %v1044 = vpack.c.b16 %v804, %v800
    %v1045 = vpack.c.b16 %v805, %v801
    %v1046 = vpack.c.b16 %v810, %v806
    %v1047 = vpack.c.b16 %v811, %v807
    %v1048 = vpack.c.b16 %v812, %v808
    %v1049 = vpack.c.b16 %v813, %v809
    %v1050 = vpack.c.b16 %v818, %v814
    %v1051 = vpack.c.b16 %v819, %v815
    %v1052 = vpack.c.b16 %v820, %v816
    %v1053 = vpack.c.b16 %v821, %v817
    %v1054 = vpack.c.b16 %v826, %v822
    %v1055 = vpack.c.b16 %v827, %v823
    %v1056 = vpack.c.b16 %v828, %v824
    %v1057 = vpack.c.b16 %v829, %v825
    %v1058 = vpack.c.b16 %v834, %v830
    %v1059 = vpack.c.b16 %v835, %v831
    %v1060 = vpack.c.b16 %v836, %v832
    %v1061 = vpack.c.b16 %v837, %v833
    %v1062 = vpack.c.b16 %v842, %v838
    %v1063 = vpack.c.b16 %v843, %v839
    %v1064 = vpack.c.b16 %v844, %v840
    %v1065 = vpack.c.b16 %v845, %v841
    %v1066 = vpack.c.b16 %v850, %v846
    %v1067 = vpack.c.b16 %v851, %v847
    %v1068 = vpack.c.b16 %v852, %v848
    %v1069 = vpack.c.b16 %v853, %v849
    %v1070 = vpack.c.b16 %v858, %v854
    %v1071 = vpack.c.b16 %v859, %v855
    %v1072 = vpack.c.b16 %v860, %v856
    %v1073 = vpack.c.b16 %v861, %v857
    %v1074 = vpack.c.b16 %v866, %v862
    %v1075 = vpack.c.b16 %v867, %v863
    %v1076 = vpack.c.b16 %v868, %v864
    %v1077 = vpack.c.b16 %v869, %v865
    %v1078 = vpack.c.b16 %v874, %v870
    %v1079 = vpack.c.b16 %v875, %v871
    %v1080 = vpack.c.b16 %v876, %v872
    %v1081 = vpack.c.b16 %v877, %v873
    %v1082 = vpack.c.b16 %v882, %v878
    %v1083 = vpack.c.b16 %v883, %v879
    %v1084 = vpack.c.b16 %v884, %v880
    %v1085 = vpack.c.b16 %v885, %v881
    %v1086 = vpack.c.b16 %v890, %v886
    %v1087 = vpack.c.b16 %v891, %v887
    %v1088 = vpack.c.b16 %v892, %v888
    %v1089 = vpack.c.b16 %v893, %v889
    %vm1286 = vcmask 130048
    %v1288 = vsel %vm1286, %v299, 0
    %1290 = vmatpush.bf16.msra.mxu0 %v922
    %1291 = vmatpush.bf16.msra.mxu0 %v918
    %1292 = vmatpush.bf16.msra.mxu0 %v914
    %1293 = vmatpush.bf16.msra.mxu0 %v910
    %1294 = vmatpush.bf16.msra.mxu0 %v906
    %1295 = vmatpush.bf16.msra.mxu0 %v902
    %1296 = vmatpush.bf16.msra.mxu0 %v898
    %1297 = vmatpush.bf16.msra.mxu0 %v894
    %1298 = vmatmul.bf16.gmra.mxu0 %v293
    %v1299 = vpop.f32.mrf.mxu0
    %v1300 = vadd.f32 %v274, %v1299
    %v1301 = vpop.f32.mrf.mxu0
    %1302 = vdwg.mxu0
    %1303 = vmatpush.bf16.msra.mxu0 %v954
    %1304 = vmatpush.bf16.msra.mxu0 %v950
    %1305 = vmatpush.bf16.msra.mxu0 %v946
    %1306 = vmatpush.bf16.msra.mxu0 %v942
    %1307 = vmatpush.bf16.msra.mxu0 %v938
    %1308 = vmatpush.bf16.msra.mxu0 %v934
    %1309 = vmatpush.bf16.msra.mxu0 %v930
    %1310 = vmatpush.bf16.msra.mxu0 %v926
    %1311 = vmatmul.bf16.gmra.mxu0 %v294
    %v1312 = vpop.f32.mrf.mxu0
    %v1313 = vadd.f32 %v1300, %v1312
    %v1314 = vpop.f32.mrf.mxu0
    %1315 = vdwg.mxu0
    %1316 = vmatpush.bf16.msra.mxu0 %v986
    %1317 = vmatpush.bf16.msra.mxu0 %v982
    %1318 = vmatpush.bf16.msra.mxu0 %v978
    %1319 = vmatpush.bf16.msra.mxu0 %v974
    %1320 = vmatpush.bf16.msra.mxu0 %v970
    %1321 = vmatpush.bf16.msra.mxu0 %v966
    %1322 = vmatpush.bf16.msra.mxu0 %v962
    %1323 = vmatpush.bf16.msra.mxu0 %v958
    %1324 = vmatmul.bf16.gmra.mxu0 %v295
    %v1325 = vpop.f32.mrf.mxu0
    %v1326 = vadd.f32 %v1313, %v1325
    %v1327 = vpop.f32.mrf.mxu0
    %1328 = vdwg.mxu0
    %1329 = vmatpush.bf16.msra.mxu0 %v1018
    %1330 = vmatpush.bf16.msra.mxu0 %v1014
    %1331 = vmatpush.bf16.msra.mxu0 %v1010
    %1332 = vmatpush.bf16.msra.mxu0 %v1006
    %1333 = vmatpush.bf16.msra.mxu0 %v1002
    %1334 = vmatpush.bf16.msra.mxu0 %v998
    %1335 = vmatpush.bf16.msra.mxu0 %v994
    %1336 = vmatpush.bf16.msra.mxu0 %v990
    %1337 = vmatmul.bf16.gmra.mxu0 %v296
    %v1338 = vpop.f32.mrf.mxu0
    %v1339 = vadd.f32 %v1326, %v1338
    %v1340 = vpop.f32.mrf.mxu0
    %1341 = vdwg.mxu0
    %1342 = vmatpush.bf16.msra.mxu0 %v1050
    %1343 = vmatpush.bf16.msra.mxu0 %v1046
    %1344 = vmatpush.bf16.msra.mxu0 %v1042
    %1345 = vmatpush.bf16.msra.mxu0 %v1038
    %1346 = vmatpush.bf16.msra.mxu0 %v1034
    %1347 = vmatpush.bf16.msra.mxu0 %v1030
    %1348 = vmatpush.bf16.msra.mxu0 %v1026
    %1349 = vmatpush.bf16.msra.mxu0 %v1022
    %1350 = vmatmul.bf16.gmra.mxu0 %v297
    %v1351 = vpop.f32.mrf.mxu0
    %v1352 = vadd.f32 %v1339, %v1351
    %v1353 = vpop.f32.mrf.mxu0
    %1354 = vdwg.mxu0
    %1355 = vmatpush.bf16.msra.mxu0 %v1082
    %1356 = vmatpush.bf16.msra.mxu0 %v1078
    %1357 = vmatpush.bf16.msra.mxu0 %v1074
    %1358 = vmatpush.bf16.msra.mxu0 %v1070
    %1359 = vmatpush.bf16.msra.mxu0 %v1066
    %1360 = vmatpush.bf16.msra.mxu0 %v1062
    %1361 = vmatpush.bf16.msra.mxu0 %v1058
    %1362 = vmatpush.bf16.msra.mxu0 %v1054
    %1363 = vmatmul.bf16.gmra.mxu0 %v298
    %v1364 = vpop.f32.mrf.mxu0
    %v1365 = vadd.f32 %v1352, %v1364
    %v1366 = vpop.f32.mrf.mxu0
    %1367 = vdwg.mxu0
    %1368 = vmatpush.bf16.msra.mxu0 0
    %1369 = vmatpush.bf16.msra.mxu0 0
    %1370 = vmatpush.bf16.msra.mxu0 0
    %1371 = vmatpush.bf16.msra.mxu0 0
    %1372 = vmatpush.bf16.msra.mxu0 0
    %1373 = vmatpush.bf16.msra.mxu0 0
    %1374 = vmatpush.bf16.msra.mxu0 0
    %1375 = vmatpush.bf16.msra.mxu0 %v1086
    %1376 = vmatmul.bf16.gmra.mxu0 %v1288
    %v1377 = vpop.f32.mrf.mxu0
    %v1378 = vadd.f32 %v1365, %v1377
    %v1379 = vpop.f32.mrf.mxu0
    %1380 = vdwg.mxu0
    %1381 = vmatpush.bf16.msra.mxu0 %v923
    %1382 = vmatpush.bf16.msra.mxu0 %v919
    %1383 = vmatpush.bf16.msra.mxu0 %v915
    %1384 = vmatpush.bf16.msra.mxu0 %v911
    %1385 = vmatpush.bf16.msra.mxu0 %v907
    %1386 = vmatpush.bf16.msra.mxu0 %v903
    %1387 = vmatpush.bf16.msra.mxu0 %v899
    %1388 = vmatpush.bf16.msra.mxu0 %v895
    %1389 = vmatmul.bf16.gmra.mxu0 %v293
    %v1390 = vpop.f32.mrf.mxu0
    %v1391 = vadd.f32 %v275, %v1390
    %v1392 = vpop.f32.mrf.mxu0
    %1393 = vdwg.mxu0
    %1394 = vmatpush.bf16.msra.mxu0 %v955
    %1395 = vmatpush.bf16.msra.mxu0 %v951
    %1396 = vmatpush.bf16.msra.mxu0 %v947
    %1397 = vmatpush.bf16.msra.mxu0 %v943
    %1398 = vmatpush.bf16.msra.mxu0 %v939
    %1399 = vmatpush.bf16.msra.mxu0 %v935
    %1400 = vmatpush.bf16.msra.mxu0 %v931
    %1401 = vmatpush.bf16.msra.mxu0 %v927
    %1402 = vmatmul.bf16.gmra.mxu0 %v294
    %v1403 = vpop.f32.mrf.mxu0
    %v1404 = vadd.f32 %v1391, %v1403
    %v1405 = vpop.f32.mrf.mxu0
    %1406 = vdwg.mxu0
    %1407 = vmatpush.bf16.msra.mxu0 %v987
    %1408 = vmatpush.bf16.msra.mxu0 %v983
    %1409 = vmatpush.bf16.msra.mxu0 %v979
    %1410 = vmatpush.bf16.msra.mxu0 %v975
    %1411 = vmatpush.bf16.msra.mxu0 %v971
    %1412 = vmatpush.bf16.msra.mxu0 %v967
    %1413 = vmatpush.bf16.msra.mxu0 %v963
    %1414 = vmatpush.bf16.msra.mxu0 %v959
    %1415 = vmatmul.bf16.gmra.mxu0 %v295
    %v1416 = vpop.f32.mrf.mxu0
    %v1417 = vadd.f32 %v1404, %v1416
    %v1418 = vpop.f32.mrf.mxu0
    %1419 = vdwg.mxu0
    %1420 = vmatpush.bf16.msra.mxu0 %v1019
    %1421 = vmatpush.bf16.msra.mxu0 %v1015
    %1422 = vmatpush.bf16.msra.mxu0 %v1011
    %1423 = vmatpush.bf16.msra.mxu0 %v1007
    %1424 = vmatpush.bf16.msra.mxu0 %v1003
    %1425 = vmatpush.bf16.msra.mxu0 %v999
    %1426 = vmatpush.bf16.msra.mxu0 %v995
    %1427 = vmatpush.bf16.msra.mxu0 %v991
    %1428 = vmatmul.bf16.gmra.mxu0 %v296
    %v1429 = vpop.f32.mrf.mxu0
    %v1430 = vadd.f32 %v1417, %v1429
    %v1431 = vpop.f32.mrf.mxu0
    %1432 = vdwg.mxu0
    %1433 = vmatpush.bf16.msra.mxu0 %v1051
    %1434 = vmatpush.bf16.msra.mxu0 %v1047
    %1435 = vmatpush.bf16.msra.mxu0 %v1043
    %1436 = vmatpush.bf16.msra.mxu0 %v1039
    %1437 = vmatpush.bf16.msra.mxu0 %v1035
    %1438 = vmatpush.bf16.msra.mxu0 %v1031
    %1439 = vmatpush.bf16.msra.mxu0 %v1027
    %1440 = vmatpush.bf16.msra.mxu0 %v1023
    %1441 = vmatmul.bf16.gmra.mxu0 %v297
    %v1442 = vpop.f32.mrf.mxu0
    %v1443 = vadd.f32 %v1430, %v1442
    %v1444 = vpop.f32.mrf.mxu0
    %1445 = vdwg.mxu0
    %1446 = vmatpush.bf16.msra.mxu0 %v1083
    %1447 = vmatpush.bf16.msra.mxu0 %v1079
    %1448 = vmatpush.bf16.msra.mxu0 %v1075
    %1449 = vmatpush.bf16.msra.mxu0 %v1071
    %1450 = vmatpush.bf16.msra.mxu0 %v1067
    %1451 = vmatpush.bf16.msra.mxu0 %v1063
    %1452 = vmatpush.bf16.msra.mxu0 %v1059
    %1453 = vmatpush.bf16.msra.mxu0 %v1055
    %1454 = vmatmul.bf16.gmra.mxu0 %v298
    %v1455 = vpop.f32.mrf.mxu0
    %v1456 = vadd.f32 %v1443, %v1455
    %v1457 = vpop.f32.mrf.mxu0
    %1458 = vdwg.mxu0
    %1459 = vmatpush.bf16.msra.mxu0 0
    %1460 = vmatpush.bf16.msra.mxu0 0
    %1461 = vmatpush.bf16.msra.mxu0 0
    %1462 = vmatpush.bf16.msra.mxu0 0
    %1463 = vmatpush.bf16.msra.mxu0 0
    %1464 = vmatpush.bf16.msra.mxu0 0
    %1465 = vmatpush.bf16.msra.mxu0 0
    %1466 = vmatpush.bf16.msra.mxu0 %v1087
    %1467 = vmatmul.bf16.gmra.mxu0 %v1288
    %v1468 = vpop.f32.mrf.mxu0
    %v1469 = vadd.f32 %v1456, %v1468
    %v1470 = vpop.f32.mrf.mxu0
    %1471 = vdwg.mxu0
    %1472 = vmatpush.bf16.msra.mxu0 %v924
    %1473 = vmatpush.bf16.msra.mxu0 %v920
    %1474 = vmatpush.bf16.msra.mxu0 %v916
    %1475 = vmatpush.bf16.msra.mxu0 %v912
    %1476 = vmatpush.bf16.msra.mxu0 %v908
    %1477 = vmatpush.bf16.msra.mxu0 %v904
    %1478 = vmatpush.bf16.msra.mxu0 %v900
    %1479 = vmatpush.bf16.msra.mxu0 %v896
    %1480 = vmatmul.bf16.gmra.mxu0 %v293
    %v1481 = vpop.f32.mrf.mxu0
    %v1482 = vadd.f32 %v276, %v1481
    %v1483 = vpop.f32.mrf.mxu0
    %1484 = vdwg.mxu0
    %1485 = vmatpush.bf16.msra.mxu0 %v956
    %1486 = vmatpush.bf16.msra.mxu0 %v952
    %1487 = vmatpush.bf16.msra.mxu0 %v948
    %1488 = vmatpush.bf16.msra.mxu0 %v944
    %1489 = vmatpush.bf16.msra.mxu0 %v940
    %1490 = vmatpush.bf16.msra.mxu0 %v936
    %1491 = vmatpush.bf16.msra.mxu0 %v932
    %1492 = vmatpush.bf16.msra.mxu0 %v928
    %1493 = vmatmul.bf16.gmra.mxu0 %v294
    %v1494 = vpop.f32.mrf.mxu0
    %v1495 = vadd.f32 %v1482, %v1494
    %v1496 = vpop.f32.mrf.mxu0
    %1497 = vdwg.mxu0
    %1498 = vmatpush.bf16.msra.mxu0 %v988
    %1499 = vmatpush.bf16.msra.mxu0 %v984
    %1500 = vmatpush.bf16.msra.mxu0 %v980
    %1501 = vmatpush.bf16.msra.mxu0 %v976
    %1502 = vmatpush.bf16.msra.mxu0 %v972
    %1503 = vmatpush.bf16.msra.mxu0 %v968
    %1504 = vmatpush.bf16.msra.mxu0 %v964
    %1505 = vmatpush.bf16.msra.mxu0 %v960
    %1506 = vmatmul.bf16.gmra.mxu0 %v295
    %v1507 = vpop.f32.mrf.mxu0
    %v1508 = vadd.f32 %v1495, %v1507
    %v1509 = vpop.f32.mrf.mxu0
    %1510 = vdwg.mxu0
    %1511 = vmatpush.bf16.msra.mxu0 %v1020
    %1512 = vmatpush.bf16.msra.mxu0 %v1016
    %1513 = vmatpush.bf16.msra.mxu0 %v1012
    %1514 = vmatpush.bf16.msra.mxu0 %v1008
    %1515 = vmatpush.bf16.msra.mxu0 %v1004
    %1516 = vmatpush.bf16.msra.mxu0 %v1000
    %1517 = vmatpush.bf16.msra.mxu0 %v996
    %1518 = vmatpush.bf16.msra.mxu0 %v992
    %1519 = vmatmul.bf16.gmra.mxu0 %v296
    %v1520 = vpop.f32.mrf.mxu0
    %v1521 = vadd.f32 %v1508, %v1520
    %v1522 = vpop.f32.mrf.mxu0
    %1523 = vdwg.mxu0
    %1524 = vmatpush.bf16.msra.mxu0 %v1052
    %1525 = vmatpush.bf16.msra.mxu0 %v1048
    %1526 = vmatpush.bf16.msra.mxu0 %v1044
    %1527 = vmatpush.bf16.msra.mxu0 %v1040
    %1528 = vmatpush.bf16.msra.mxu0 %v1036
    %1529 = vmatpush.bf16.msra.mxu0 %v1032
    %1530 = vmatpush.bf16.msra.mxu0 %v1028
    %1531 = vmatpush.bf16.msra.mxu0 %v1024
    %1532 = vmatmul.bf16.gmra.mxu0 %v297
    %v1533 = vpop.f32.mrf.mxu0
    %v1534 = vadd.f32 %v1521, %v1533
    %v1535 = vpop.f32.mrf.mxu0
    %1536 = vdwg.mxu0
    %1537 = vmatpush.bf16.msra.mxu0 %v1084
    %1538 = vmatpush.bf16.msra.mxu0 %v1080
    %1539 = vmatpush.bf16.msra.mxu0 %v1076
    %1540 = vmatpush.bf16.msra.mxu0 %v1072
    %1541 = vmatpush.bf16.msra.mxu0 %v1068
    %1542 = vmatpush.bf16.msra.mxu0 %v1064
    %1543 = vmatpush.bf16.msra.mxu0 %v1060
    %1544 = vmatpush.bf16.msra.mxu0 %v1056
    %1545 = vmatmul.bf16.gmra.mxu0 %v298
    %v1546 = vpop.f32.mrf.mxu0
    %v1547 = vadd.f32 %v1534, %v1546
    %v1548 = vpop.f32.mrf.mxu0
    %1549 = vdwg.mxu0
    %1550 = vmatpush.bf16.msra.mxu0 0
    %1551 = vmatpush.bf16.msra.mxu0 0
    %1552 = vmatpush.bf16.msra.mxu0 0
    %1553 = vmatpush.bf16.msra.mxu0 0
    %1554 = vmatpush.bf16.msra.mxu0 0
    %1555 = vmatpush.bf16.msra.mxu0 0
    %1556 = vmatpush.bf16.msra.mxu0 0
    %1557 = vmatpush.bf16.msra.mxu0 %v1088
    %1558 = vmatmul.bf16.gmra.mxu0 %v1288
    %v1559 = vpop.f32.mrf.mxu0
    %v1560 = vadd.f32 %v1547, %v1559
    %v1561 = vpop.f32.mrf.mxu0
    %1562 = vdwg.mxu0
    %1563 = vmatpush.bf16.msra.mxu0 %v925
    %1564 = vmatpush.bf16.msra.mxu0 %v921
    %1565 = vmatpush.bf16.msra.mxu0 %v917
    %1566 = vmatpush.bf16.msra.mxu0 %v913
    %1567 = vmatpush.bf16.msra.mxu0 %v909
    %1568 = vmatpush.bf16.msra.mxu0 %v905
    %1569 = vmatpush.bf16.msra.mxu0 %v901
    %1570 = vmatpush.bf16.msra.mxu0 %v897
    %1571 = vmatmul.bf16.gmra.mxu0 %v293
    %v1572 = vpop.f32.mrf.mxu0
    %v1573 = vadd.f32 %v277, %v1572
    %v1574 = vpop.f32.mrf.mxu0
    %1575 = vdwg.mxu0
    %1576 = vmatpush.bf16.msra.mxu0 %v957
    %1577 = vmatpush.bf16.msra.mxu0 %v953
    %1578 = vmatpush.bf16.msra.mxu0 %v949
    %1579 = vmatpush.bf16.msra.mxu0 %v945
    %1580 = vmatpush.bf16.msra.mxu0 %v941
    %1581 = vmatpush.bf16.msra.mxu0 %v937
    %1582 = vmatpush.bf16.msra.mxu0 %v933
    %1583 = vmatpush.bf16.msra.mxu0 %v929
    %1584 = vmatmul.bf16.gmra.mxu0 %v294
    %v1585 = vpop.f32.mrf.mxu0
    %v1586 = vadd.f32 %v1573, %v1585
    %v1587 = vpop.f32.mrf.mxu0
    %1588 = vdwg.mxu0
    %1589 = vmatpush.bf16.msra.mxu0 %v989
    %1590 = vmatpush.bf16.msra.mxu0 %v985
    %1591 = vmatpush.bf16.msra.mxu0 %v981
    %1592 = vmatpush.bf16.msra.mxu0 %v977
    %1593 = vmatpush.bf16.msra.mxu0 %v973
    %1594 = vmatpush.bf16.msra.mxu0 %v969
    %1595 = vmatpush.bf16.msra.mxu0 %v965
    %1596 = vmatpush.bf16.msra.mxu0 %v961
    %1597 = vmatmul.bf16.gmra.mxu0 %v295
    %v1598 = vpop.f32.mrf.mxu0
    %v1599 = vadd.f32 %v1586, %v1598
    %v1600 = vpop.f32.mrf.mxu0
    %1601 = vdwg.mxu0
    %1602 = vmatpush.bf16.msra.mxu0 %v1021
    %1603 = vmatpush.bf16.msra.mxu0 %v1017
    %1604 = vmatpush.bf16.msra.mxu0 %v1013
    %1605 = vmatpush.bf16.msra.mxu0 %v1009
    %1606 = vmatpush.bf16.msra.mxu0 %v1005
    %1607 = vmatpush.bf16.msra.mxu0 %v1001
    %1608 = vmatpush.bf16.msra.mxu0 %v997
    %1609 = vmatpush.bf16.msra.mxu0 %v993
    %1610 = vmatmul.bf16.gmra.mxu0 %v296
    %v1611 = vpop.f32.mrf.mxu0
    %v1612 = vadd.f32 %v1599, %v1611
    %v1613 = vpop.f32.mrf.mxu0
    %1614 = vdwg.mxu0
    %1615 = vmatpush.bf16.msra.mxu0 %v1053
    %1616 = vmatpush.bf16.msra.mxu0 %v1049
    %1617 = vmatpush.bf16.msra.mxu0 %v1045
    %1618 = vmatpush.bf16.msra.mxu0 %v1041
    %1619 = vmatpush.bf16.msra.mxu0 %v1037
    %1620 = vmatpush.bf16.msra.mxu0 %v1033
    %1621 = vmatpush.bf16.msra.mxu0 %v1029
    %1622 = vmatpush.bf16.msra.mxu0 %v1025
    %1623 = vmatmul.bf16.gmra.mxu0 %v297
    %v1624 = vpop.f32.mrf.mxu0
    %v1625 = vadd.f32 %v1612, %v1624
    %v1626 = vpop.f32.mrf.mxu0
    %1627 = vdwg.mxu0
    %1628 = vmatpush.bf16.msra.mxu0 %v1085
    %1629 = vmatpush.bf16.msra.mxu0 %v1081
    %1630 = vmatpush.bf16.msra.mxu0 %v1077
    %1631 = vmatpush.bf16.msra.mxu0 %v1073
    %1632 = vmatpush.bf16.msra.mxu0 %v1069
    %1633 = vmatpush.bf16.msra.mxu0 %v1065
    %1634 = vmatpush.bf16.msra.mxu0 %v1061
    %1635 = vmatpush.bf16.msra.mxu0 %v1057
    %1636 = vmatmul.bf16.gmra.mxu0 %v298
    %v1637 = vpop.f32.mrf.mxu0
    %v1638 = vadd.f32 %v1625, %v1637
    %v1639 = vpop.f32.mrf.mxu0
    %1640 = vdwg.mxu0
    %1641 = vmatpush.bf16.msra.mxu0 0
    %1642 = vmatpush.bf16.msra.mxu0 0
    %1643 = vmatpush.bf16.msra.mxu0 0
    %1644 = vmatpush.bf16.msra.mxu0 0
    %1645 = vmatpush.bf16.msra.mxu0 0
    %1646 = vmatpush.bf16.msra.mxu0 0
    %1647 = vmatpush.bf16.msra.mxu0 0
    %1648 = vmatpush.bf16.msra.mxu0 %v1089
    %1649 = vmatmul.bf16.gmra.mxu0 %v1288
    %v1650 = vpop.f32.mrf.mxu0
    %v1651 = vadd.f32 %v1638, %v1650
    %v1652 = vpop.f32.mrf.mxu0
    %1653 = vdwg.mxu0
    %v1654 = vmax.f32 %v1378, 0.0
    %v1655 = vmax.f32 %v1469, 0.0
    %v1656 = vmax.f32 %v1560, 0.0
    %v1657 = vmax.f32 %v1651, 0.0
    %v1658 = vpack.c.bf16 %v1654, %v1654
    %v1659 = vpack.c.bf16 %v1655, %v1655
    %v1660 = vpack.c.bf16 %v1656, %v1656
    %v1661 = vpack.c.bf16 %v1657, %v1657
    %v1662 = vld [vmem:[#allocation5] sm:$0xff]
    %v1663 = vld [vmem:[#allocation5 + $0x8] sm:$0xff]
    %v1664 = vld [vmem:[#allocation5 + $0x10] sm:$0xff]
    %v1665 = vld [vmem:[#allocation5 + $0x18] sm:$0xff]
    %v1666 = vld [vmem:[#allocation5 + $0x20] sm:$0xff]
    %v1667 = vld [vmem:[#allocation5 + $0x28] sm:$0xff]
    %v1668 = vld [vmem:[#allocation5 + $0x30] sm:$0xff]
    %v1669 = vld [vmem:[#allocation5 + $0x38] sm:$0xff]
    %v1670 = vld [vmem:[#allocation5 + $0x40] sm:$0xff]
    %v1671 = vld [vmem:[#allocation5 + $0x48] sm:$0xff]
    %v1672 = vld [vmem:[#allocation5 + $0x50] sm:$0xff]
    %v1673 = vld [vmem:[#allocation5 + $0x58] sm:$0xff]
    %v1674 = vld [vmem:[#allocation5 + $0x60] sm:$0xff]
    %v1675 = vld [vmem:[#allocation5 + $0x68] sm:$0xff]
    %v1676 = vld [vmem:[#allocation5 + $0x70] sm:$0xff]
    %v1677 = vld [vmem:[#allocation5 + $0x78] sm:$0xff]
    %v1678 = vld [vmem:[#allocation5 + $0x80] sm:$0xff]
    %v1679 = vld [vmem:[#allocation5 + $0x88] sm:$0xff]
    %v1680 = vld [vmem:[#allocation5 + $0x90] sm:$0xff]
    %v1681 = vld [vmem:[#allocation5 + $0x98] sm:$0xff]
    %v1682 = vld [vmem:[#allocation5 + $0xa0] sm:$0xff]
    %v1683 = vld [vmem:[#allocation5 + $0xa8] sm:$0xff]
    %v1684 = vld [vmem:[#allocation5 + $0xb0] sm:$0xff]
    %v1685 = vld [vmem:[#allocation5 + $0xb8] sm:$0xff]
    %v1686 = vld [vmem:[#allocation5 + $0xc0] sm:$0xff]
    %v1687 = vld [vmem:[#allocation5 + $0xc8] sm:$0xff]
    %v1688 = vld [vmem:[#allocation5 + $0xd0] sm:$0xff]
    %v1689 = vld [vmem:[#allocation5 + $0xd8] sm:$0xff]
    %v1690 = vld [vmem:[#allocation5 + $0xe0] sm:$0xff]
    %v1691 = vld [vmem:[#allocation5 + $0xe8] sm:$0xff]
    %v1692 = vld [vmem:[#allocation5 + $0xf0] sm:$0xff]
    %v1693 = vld [vmem:[#allocation5 + $0xf8] sm:$0xff]
    %v1694 = vld [vmem:[#allocation5 + $0x100] sm:$0xff]
    %v1695 = vld [vmem:[#allocation5 + $0x108] sm:$0xff]
    %v1696 = vld [vmem:[#allocation5 + $0x110] sm:$0xff]
    %v1697 = vld [vmem:[#allocation5 + $0x118] sm:$0xff]
    %v1698 = vld [vmem:[#allocation5 + $0x120] sm:$0xff]
    %v1699 = vld [vmem:[#allocation5 + $0x128] sm:$0xff]
    %v1700 = vld [vmem:[#allocation5 + $0x130] sm:$0xff]
    %v1701 = vld [vmem:[#allocation5 + $0x138] sm:$0xff]
    %v1702 = vld [vmem:[#allocation5 + $0x140] sm:$0xff]
    %v1703 = vld [vmem:[#allocation5 + $0x148] sm:$0xff]
    %v1704 = vld [vmem:[#allocation5 + $0x150] sm:$0xff]
    %v1705 = vld [vmem:[#allocation5 + $0x158] sm:$0xff]
    %v1706 = vld [vmem:[#allocation5 + $0x160] sm:$0xff]
    %v1707 = vld [vmem:[#allocation5 + $0x168] sm:$0xff]
    %v1708 = vld [vmem:[#allocation5 + $0x170] sm:$0xff]
    %v1709 = vld [vmem:[#allocation5 + $0x178] sm:$0xff]
    %v1710 = vld [vmem:[#allocation5 + $0x180] sm:$0xff]
    %v1711 = vld [vmem:[#allocation5 + $0x188] sm:$0xff]
    %v1712 = vld [vmem:[#allocation5 + $0x190] sm:$0xff]
    %v1713 = vld [vmem:[#allocation5 + $0x198] sm:$0xff]
    %v1714 = vld [vmem:[#allocation5 + $0x1a0] sm:$0xff]
    %v1715 = vld [vmem:[#allocation5 + $0x1a8] sm:$0xff]
    %v1716 = vld [vmem:[#allocation5 + $0x1b0] sm:$0xff]
    %v1717 = vld [vmem:[#allocation5 + $0x1b8] sm:$0xff]
    %v1718 = vld [vmem:[#allocation5 + $0x1c0] sm:$0xff]
    %v1719 = vld [vmem:[#allocation5 + $0x1c8] sm:$0xff]
    %v1720 = vld [vmem:[#allocation5 + $0x1d0] sm:$0xff]
    %v1721 = vld [vmem:[#allocation5 + $0x1d8] sm:$0xff]
    %v1722 = vld [vmem:[#allocation5 + $0x1e0] sm:$0xff]
    %v1723 = vld [vmem:[#allocation5 + $0x1e8] sm:$0xff]
    %v1724 = vld [vmem:[#allocation5 + $0x1f0] sm:$0xff]
    %v1725 = vld [vmem:[#allocation5 + $0x1f8] sm:$0xff]
    %v1726 = vld [vmem:[%s4] sm:$0x3]
    %v1728 = vperm.slane %v1726, 0
    %v1729 = vperm.slane %v1726, 1
    %v1796 = vunpack.c.l.b16 %v1662
    %v1797 = vunpack.c.h.b16 %v1662
    %v1798 = vunpack.c.l.b16 %v1663
    %v1799 = vunpack.c.h.b16 %v1663
    %v1800 = vunpack.c.l.b16 %v1664
    %v1801 = vunpack.c.h.b16 %v1664
    %v1802 = vunpack.c.l.b16 %v1665
    %v1803 = vunpack.c.h.b16 %v1665
    %v1804 = vunpack.c.l.b16 %v1666
    %v1805 = vunpack.c.h.b16 %v1666
    %v1806 = vunpack.c.l.b16 %v1667
    %v1807 = vunpack.c.h.b16 %v1667
    %v1808 = vunpack.c.l.b16 %v1668
    %v1809 = vunpack.c.h.b16 %v1668
    %v1810 = vunpack.c.l.b16 %v1669
    %v1811 = vunpack.c.h.b16 %v1669
    %v1812 = vunpack.c.l.b16 %v1670
    %v1813 = vunpack.c.h.b16 %v1670
    %v1814 = vunpack.c.l.b16 %v1671
    %v1815 = vunpack.c.h.b16 %v1671
    %v1816 = vunpack.c.l.b16 %v1672
    %v1817 = vunpack.c.h.b16 %v1672
    %v1818 = vunpack.c.l.b16 %v1673
    %v1819 = vunpack.c.h.b16 %v1673
    %v1820 = vunpack.c.l.b16 %v1674
    %v1821 = vunpack.c.h.b16 %v1674
    %v1822 = vunpack.c.l.b16 %v1675
    %v1823 = vunpack.c.h.b16 %v1675
    %v1824 = vunpack.c.l.b16 %v1676
    %v1825 = vunpack.c.h.b16 %v1676
    %v1826 = vunpack.c.l.b16 %v1677
    %v1827 = vunpack.c.h.b16 %v1677
    %v1828 = vunpack.c.l.b16 %v1678
    %v1829 = vunpack.c.h.b16 %v1678
    %v1830 = vunpack.c.l.b16 %v1679
    %v1831 = vunpack.c.h.b16 %v1679
    %v1832 = vunpack.c.l.b16 %v1680
    %v1833 = vunpack.c.h.b16 %v1680
    %v1834 = vunpack.c.l.b16 %v1681
    %v1835 = vunpack.c.h.b16 %v1681
    %v1836 = vunpack.c.l.b16 %v1682
    %v1837 = vunpack.c.h.b16 %v1682
    %v1838 = vunpack.c.l.b16 %v1683
    %v1839 = vunpack.c.h.b16 %v1683
    %v1840 = vunpack.c.l.b16 %v1684
    %v1841 = vunpack.c.h.b16 %v1684
    %v1842 = vunpack.c.l.b16 %v1685
    %v1843 = vunpack.c.h.b16 %v1685
    %v1844 = vunpack.c.l.b16 %v1686
    %v1845 = vunpack.c.h.b16 %v1686
    %v1846 = vunpack.c.l.b16 %v1687
    %v1847 = vunpack.c.h.b16 %v1687
    %v1848 = vunpack.c.l.b16 %v1688
    %v1849 = vunpack.c.h.b16 %v1688
    %v1850 = vunpack.c.l.b16 %v1689
    %v1851 = vunpack.c.h.b16 %v1689
    %v1852 = vunpack.c.l.b16 %v1690
    %v1853 = vunpack.c.h.b16 %v1690
    %v1854 = vunpack.c.l.b16 %v1691
    %v1855 = vunpack.c.h.b16 %v1691
    %v1856 = vunpack.c.l.b16 %v1692
    %v1857 = vunpack.c.h.b16 %v1692
    %v1858 = vunpack.c.l.b16 %v1693
    %v1859 = vunpack.c.h.b16 %v1693
    %v1860 = vunpack.c.l.b16 %v1694
    %v1861 = vunpack.c.h.b16 %v1694
    %v1862 = vunpack.c.l.b16 %v1695
    %v1863 = vunpack.c.h.b16 %v1695
    %v1864 = vunpack.c.l.b16 %v1696
    %v1865 = vunpack.c.h.b16 %v1696
    %v1866 = vunpack.c.l.b16 %v1697
    %v1867 = vunpack.c.h.b16 %v1697
    %v1868 = vunpack.c.l.b16 %v1698
    %v1869 = vunpack.c.h.b16 %v1698
    %v1870 = vunpack.c.l.b16 %v1699
    %v1871 = vunpack.c.h.b16 %v1699
    %v1872 = vunpack.c.l.b16 %v1700
    %v1873 = vunpack.c.h.b16 %v1700
    %v1874 = vunpack.c.l.b16 %v1701
    %v1875 = vunpack.c.h.b16 %v1701
    %v1876 = vunpack.c.l.b16 %v1702
    %v1877 = vunpack.c.h.b16 %v1702
    %v1878 = vunpack.c.l.b16 %v1703
    %v1879 = vunpack.c.h.b16 %v1703
    %v1880 = vunpack.c.l.b16 %v1704
    %v1881 = vunpack.c.h.b16 %v1704
    %v1882 = vunpack.c.l.b16 %v1705
    %v1883 = vunpack.c.h.b16 %v1705
    %v1884 = vunpack.c.l.b16 %v1706
    %v1885 = vunpack.c.h.b16 %v1706
    %v1886 = vunpack.c.l.b16 %v1707
    %v1887 = vunpack.c.h.b16 %v1707
    %v1888 = vunpack.c.l.b16 %v1708
    %v1889 = vunpack.c.h.b16 %v1708
    %v1890 = vunpack.c.l.b16 %v1709
    %v1891 = vunpack.c.h.b16 %v1709
    %v1892 = vunpack.c.l.b16 %v1710
    %v1893 = vunpack.c.h.b16 %v1710
    %v1894 = vunpack.c.l.b16 %v1711
    %v1895 = vunpack.c.h.b16 %v1711
    %v1896 = vunpack.c.l.b16 %v1712
    %v1897 = vunpack.c.h.b16 %v1712
    %v1898 = vunpack.c.l.b16 %v1713
    %v1899 = vunpack.c.h.b16 %v1713
    %v1900 = vunpack.c.l.b16 %v1714
    %v1901 = vunpack.c.h.b16 %v1714
    %v1902 = vunpack.c.l.b16 %v1715
    %v1903 = vunpack.c.h.b16 %v1715
    %v1904 = vunpack.c.l.b16 %v1716
    %v1905 = vunpack.c.h.b16 %v1716
    %v1906 = vunpack.c.l.b16 %v1717
    %v1907 = vunpack.c.h.b16 %v1717
    %v1908 = vunpack.c.l.b16 %v1718
    %v1909 = vunpack.c.h.b16 %v1718
    %v1910 = vunpack.c.l.b16 %v1719
    %v1911 = vunpack.c.h.b16 %v1719
    %v1912 = vunpack.c.l.b16 %v1720
    %v1913 = vunpack.c.h.b16 %v1720
    %v1914 = vunpack.c.l.b16 %v1721
    %v1915 = vunpack.c.h.b16 %v1721
    %v1916 = vunpack.c.l.b16 %v1722
    %v1917 = vunpack.c.h.b16 %v1722
    %v1918 = vunpack.c.l.b16 %v1723
    %v1919 = vunpack.c.h.b16 %v1723
    %v1920 = vunpack.c.l.b16 %v1724
    %v1921 = vunpack.c.h.b16 %v1724
    %v1922 = vunpack.c.l.b16 %v1725
    %v1923 = vunpack.c.h.b16 %v1725
    %v1924 = vpack.c.b16 %v1798, %v1796
    %v1925 = vpack.c.b16 %v1799, %v1797
    %v1926 = vpack.c.b16 %v1802, %v1800
    %v1927 = vpack.c.b16 %v1803, %v1801
    %v1928 = vpack.c.b16 %v1806, %v1804
    %v1929 = vpack.c.b16 %v1807, %v1805
    %v1930 = vpack.c.b16 %v1810, %v1808
    %v1931 = vpack.c.b16 %v1811, %v1809
    %v1932 = vpack.c.b16 %v1814, %v1812
    %v1933 = vpack.c.b16 %v1815, %v1813
    %v1934 = vpack.c.b16 %v1818, %v1816
    %v1935 = vpack.c.b16 %v1819, %v1817
    %v1936 = vpack.c.b16 %v1822, %v1820
    %v1937 = vpack.c.b16 %v1823, %v1821
    %v1938 = vpack.c.b16 %v1826, %v1824
    %v1939 = vpack.c.b16 %v1827, %v1825
    %v1940 = vpack.c.b16 %v1830, %v1828
    %v1941 = vpack.c.b16 %v1831, %v1829
    %v1942 = vpack.c.b16 %v1834, %v1832
    %v1943 = vpack.c.b16 %v1835, %v1833
    %v1944 = vpack.c.b16 %v1838, %v1836
    %v1945 = vpack.c.b16 %v1839, %v1837
    %v1946 = vpack.c.b16 %v1842, %v1840
    %v1947 = vpack.c.b16 %v1843, %v1841
    %v1948 = vpack.c.b16 %v1846, %v1844
    %v1949 = vpack.c.b16 %v1847, %v1845
    %v1950 = vpack.c.b16 %v1850, %v1848
    %v1951 = vpack.c.b16 %v1851, %v1849
    %v1952 = vpack.c.b16 %v1854, %v1852
    %v1953 = vpack.c.b16 %v1855, %v1853
    %v1954 = vpack.c.b16 %v1858, %v1856
    %v1955 = vpack.c.b16 %v1859, %v1857
    %v1956 = vpack.c.b16 %v1862, %v1860
    %v1957 = vpack.c.b16 %v1863, %v1861
    %v1958 = vpack.c.b16 %v1866, %v1864
    %v1959 = vpack.c.b16 %v1867, %v1865
    %v1960 = vpack.c.b16 %v1870, %v1868
    %v1961 = vpack.c.b16 %v1871, %v1869
    %v1962 = vpack.c.b16 %v1874, %v1872
    %v1963 = vpack.c.b16 %v1875, %v1873
    %v1964 = vpack.c.b16 %v1878, %v1876
    %v1965 = vpack.c.b16 %v1879, %v1877
    %v1966 = vpack.c.b16 %v1882, %v1880
    %v1967 = vpack.c.b16 %v1883, %v1881
    %v1968 = vpack.c.b16 %v1886, %v1884
    %v1969 = vpack.c.b16 %v1887, %v1885
    %v1970 = vpack.c.b16 %v1890, %v1888
    %v1971 = vpack.c.b16 %v1891, %v1889
    %v1972 = vpack.c.b16 %v1894, %v1892
    %v1973 = vpack.c.b16 %v1895, %v1893
    %v1974 = vpack.c.b16 %v1898, %v1896
    %v1975 = vpack.c.b16 %v1899, %v1897
    %v1976 = vpack.c.b16 %v1902, %v1900
    %v1977 = vpack.c.b16 %v1903, %v1901
    %v1978 = vpack.c.b16 %v1906, %v1904
    %v1979 = vpack.c.b16 %v1907, %v1905
    %v1980 = vpack.c.b16 %v1910, %v1908
    %v1981 = vpack.c.b16 %v1911, %v1909
    %v1982 = vpack.c.b16 %v1914, %v1912
    %v1983 = vpack.c.b16 %v1915, %v1913
    %v1984 = vpack.c.b16 %v1918, %v1916
    %v1985 = vpack.c.b16 %v1919, %v1917
    %v1986 = vpack.c.b16 %v1922, %v1920
    %v1987 = vpack.c.b16 %v1923, %v1921
    %2052 = vmatpush.bf16.msra.mxu0 %v1938
    %2053 = vmatpush.bf16.msra.mxu0 %v1936
    %2054 = vmatpush.bf16.msra.mxu0 %v1934
    %2055 = vmatpush.bf16.msra.mxu0 %v1932
    %2056 = vmatpush.bf16.msra.mxu0 %v1930
    %2057 = vmatpush.bf16.msra.mxu0 %v1928
    %2058 = vmatpush.bf16.msra.mxu0 %v1926
    %2059 = vmatpush.bf16.msra.mxu0 %v1924
    %2060 = vmatmul.bf16.gmra.mxu0 %v1658
    %v2061 = vpop.f32.mrf.mxu0
    %v2062 = vadd.f32 %v1728, %v2061
    %v2063 = vpop.f32.mrf.mxu0
    %2064 = vdwg.mxu0
    %2065 = vmatpush.bf16.msra.mxu0 %v1954
    %2066 = vmatpush.bf16.msra.mxu0 %v1952
    %2067 = vmatpush.bf16.msra.mxu0 %v1950
    %2068 = vmatpush.bf16.msra.mxu0 %v1948
    %2069 = vmatpush.bf16.msra.mxu0 %v1946
    %2070 = vmatpush.bf16.msra.mxu0 %v1944
    %2071 = vmatpush.bf16.msra.mxu0 %v1942
    %2072 = vmatpush.bf16.msra.mxu0 %v1940
    %2073 = vmatmul.bf16.gmra.mxu0 %v1659
    %v2074 = vpop.f32.mrf.mxu0
    %v2075 = vadd.f32 %v2062, %v2074
    %v2076 = vpop.f32.mrf.mxu0
    %2077 = vdwg.mxu0
    %2078 = vmatpush.bf16.msra.mxu0 %v1970
    %2079 = vmatpush.bf16.msra.mxu0 %v1968
    %2080 = vmatpush.bf16.msra.mxu0 %v1966
    %2081 = vmatpush.bf16.msra.mxu0 %v1964
    %2082 = vmatpush.bf16.msra.mxu0 %v1962
    %2083 = vmatpush.bf16.msra.mxu0 %v1960
    %2084 = vmatpush.bf16.msra.mxu0 %v1958
    %2085 = vmatpush.bf16.msra.mxu0 %v1956
    %2086 = vmatmul.bf16.gmra.mxu0 %v1660
    %v2087 = vpop.f32.mrf.mxu0
    %v2088 = vadd.f32 %v2075, %v2087
    %v2089 = vpop.f32.mrf.mxu0
    %2090 = vdwg.mxu0
    %2091 = vmatpush.bf16.msra.mxu0 %v1986
    %2092 = vmatpush.bf16.msra.mxu0 %v1984
    %2093 = vmatpush.bf16.msra.mxu0 %v1982
    %2094 = vmatpush.bf16.msra.mxu0 %v1980
    %2095 = vmatpush.bf16.msra.mxu0 %v1978
    %2096 = vmatpush.bf16.msra.mxu0 %v1976
    %2097 = vmatpush.bf16.msra.mxu0 %v1974
    %2098 = vmatpush.bf16.msra.mxu0 %v1972
    %2099 = vmatmul.bf16.gmra.mxu0 %v1661
    %v2100 = vpop.f32.mrf.mxu0
    %v2101 = vadd.f32 %v2088, %v2100
    %v2102 = vpop.f32.mrf.mxu0
    %2103 = vdwg.mxu0
    %2104 = vmatpush.bf16.msra.mxu0 %v1939
    %2105 = vmatpush.bf16.msra.mxu0 %v1937
    %2106 = vmatpush.bf16.msra.mxu0 %v1935
    %2107 = vmatpush.bf16.msra.mxu0 %v1933
    %2108 = vmatpush.bf16.msra.mxu0 %v1931
    %2109 = vmatpush.bf16.msra.mxu0 %v1929
    %2110 = vmatpush.bf16.msra.mxu0 %v1927
    %2111 = vmatpush.bf16.msra.mxu0 %v1925
    %2112 = vmatmul.bf16.gmra.mxu0 %v1658
    %v2113 = vpop.f32.mrf.mxu0
    %v2114 = vadd.f32 %v1729, %v2113
    %v2115 = vpop.f32.mrf.mxu0
    %2116 = vdwg.mxu0
    %2117 = vmatpush.bf16.msra.mxu0 %v1955
    %2118 = vmatpush.bf16.msra.mxu0 %v1953
    %2119 = vmatpush.bf16.msra.mxu0 %v1951
    %2120 = vmatpush.bf16.msra.mxu0 %v1949
    %2121 = vmatpush.bf16.msra.mxu0 %v1947
    %2122 = vmatpush.bf16.msra.mxu0 %v1945
    %2123 = vmatpush.bf16.msra.mxu0 %v1943
    %2124 = vmatpush.bf16.msra.mxu0 %v1941
    %2125 = vmatmul.bf16.gmra.mxu0 %v1659
    %v2126 = vpop.f32.mrf.mxu0
    %v2127 = vadd.f32 %v2114, %v2126
    %v2128 = vpop.f32.mrf.mxu0
    %2129 = vdwg.mxu0
    %2130 = vmatpush.bf16.msra.mxu0 %v1971
    %2131 = vmatpush.bf16.msra.mxu0 %v1969
    %2132 = vmatpush.bf16.msra.mxu0 %v1967
    %2133 = vmatpush.bf16.msra.mxu0 %v1965
    %2134 = vmatpush.bf16.msra.mxu0 %v1963
    %2135 = vmatpush.bf16.msra.mxu0 %v1961
    %2136 = vmatpush.bf16.msra.mxu0 %v1959
    %2137 = vmatpush.bf16.msra.mxu0 %v1957
    %2138 = vmatmul.bf16.gmra.mxu0 %v1660
    %v2139 = vpop.f32.mrf.mxu0
    %v2140 = vadd.f32 %v2127, %v2139
    %v2141 = vpop.f32.mrf.mxu0
    %2142 = vdwg.mxu0
    %2143 = vmatpush.bf16.msra.mxu0 %v1987
    %2144 = vmatpush.bf16.msra.mxu0 %v1985
    %2145 = vmatpush.bf16.msra.mxu0 %v1983
    %2146 = vmatpush.bf16.msra.mxu0 %v1981
    %2147 = vmatpush.bf16.msra.mxu0 %v1979
    %2148 = vmatpush.bf16.msra.mxu0 %v1977
    %2149 = vmatpush.bf16.msra.mxu0 %v1975
    %2150 = vmatpush.bf16.msra.mxu0 %v1973
    %2151 = vmatmul.bf16.gmra.mxu0 %v1661
    %v2152 = vpop.f32.mrf.mxu0
    %v2153 = vadd.f32 %v2140, %v2152
    %v2154 = vpop.f32.mrf.mxu0
    %2155 = vdwg.mxu0
    %v2156 = vmax.f32 %v2101, 0.0
    %v2157 = vmax.f32 %v2153, 0.0
    %v2158 = vpack.c.bf16 %v2156, %v2156
    %v2159 = vpack.c.bf16 %v2157, %v2157
    %v2160 = vld [vmem:[%s5] sm:$0xf]
    %v2161 = vld [vmem:[%s5 + $0x4] sm:$0xf]
    %v2162 = vld [vmem:[%s5 + $0x8] sm:$0xf]
    %v2163 = vld [vmem:[%s5 + $0xc] sm:$0xf]
    %v2164 = vld [vmem:[%s5 + $0x10] sm:$0xf]
    %v2165 = vld [vmem:[%s5 + $0x14] sm:$0xf]
    %v2166 = vld [vmem:[%s5 + $0x18] sm:$0xf]
    %v2167 = vld [vmem:[%s5 + $0x1c] sm:$0xf]
    %v2168 = vld [vmem:[%s5 + $0x20] sm:$0xf]
    %v2169 = vld [vmem:[%s5 + $0x24] sm:$0xf]
    %v2170 = vld [vmem:[%s5 + $0x28] sm:$0xf]
    %v2171 = vld [vmem:[%s5 + $0x2c] sm:$0xf]
    %v2172 = vld [vmem:[%s5 + $0x30] sm:$0xf]
    %v2173 = vld [vmem:[%s5 + $0x34] sm:$0xf]
    %v2174 = vld [vmem:[%s5 + $0x38] sm:$0xf]
    %v2175 = vld [vmem:[%s5 + $0x3c] sm:$0xf]
    %v2176 = vld [vmem:[%s5 + $0x40] sm:$0xf]
    %v2177 = vld [vmem:[%s5 + $0x44] sm:$0xf]
    %v2178 = vld [vmem:[%s5 + $0x48] sm:$0xf]
    %v2179 = vld [vmem:[%s5 + $0x4c] sm:$0xf]
    %v2180 = vld [vmem:[%s5 + $0x50] sm:$0xf]
    %v2181 = vld [vmem:[%s5 + $0x54] sm:$0xf]
    %v2182 = vld [vmem:[%s5 + $0x58] sm:$0xf]
    %v2183 = vld [vmem:[%s5 + $0x5c] sm:$0xf]
    %v2184 = vld [vmem:[%s5 + $0x60] sm:$0xf]
    %v2185 = vld [vmem:[%s5 + $0x64] sm:$0xf]
    %v2186 = vld [vmem:[%s5 + $0x68] sm:$0xf]
    %v2187 = vld [vmem:[%s5 + $0x6c] sm:$0xf]
    %v2188 = vld [vmem:[%s5 + $0x70] sm:$0xf]
    %v2189 = vld [vmem:[%s5 + $0x74] sm:$0xf]
    %v2190 = vld [vmem:[%s5 + $0x78] sm:$0xf]
    %v2191 = vld [vmem:[%s5 + $0x7c] sm:$0xf]
    %v2192 = vld [vmem:[%s6] sm:$0x1]
    %v2194 = vperm.slane %v2192, 0
    %v2228 = vunpack.c.l.b16 %v2160
    %v2229 = vunpack.c.l.b16 %v2161
    %v2230 = vunpack.c.l.b16 %v2162
    %v2231 = vunpack.c.l.b16 %v2163
    %v2232 = vunpack.c.l.b16 %v2164
    %v2233 = vunpack.c.l.b16 %v2165
    %v2234 = vunpack.c.l.b16 %v2166
    %v2235 = vunpack.c.l.b16 %v2167
    %v2236 = vunpack.c.l.b16 %v2168
    %v2237 = vunpack.c.l.b16 %v2169
    %v2238 = vunpack.c.l.b16 %v2170
    %v2239 = vunpack.c.l.b16 %v2171
    %v2240 = vunpack.c.l.b16 %v2172
    %v2241 = vunpack.c.l.b16 %v2173
    %v2242 = vunpack.c.l.b16 %v2174
    %v2243 = vunpack.c.l.b16 %v2175
    %v2244 = vunpack.c.l.b16 %v2176
    %v2245 = vunpack.c.l.b16 %v2177
    %v2246 = vunpack.c.l.b16 %v2178
    %v2247 = vunpack.c.l.b16 %v2179
    %v2248 = vunpack.c.l.b16 %v2180
    %v2249 = vunpack.c.l.b16 %v2181
    %v2250 = vunpack.c.l.b16 %v2182
    %v2251 = vunpack.c.l.b16 %v2183
    %v2252 = vunpack.c.l.b16 %v2184
    %v2253 = vunpack.c.l.b16 %v2185
    %v2254 = vunpack.c.l.b16 %v2186
    %v2255 = vunpack.c.l.b16 %v2187
    %v2256 = vunpack.c.l.b16 %v2188
    %v2257 = vunpack.c.l.b16 %v2189
    %v2258 = vunpack.c.l.b16 %v2190
    %v2259 = vunpack.c.l.b16 %v2191
    %v2260 = vpack.c.b16 %v2229, %v2228
    %v2261 = vpack.c.b16 %v2231, %v2230
    %v2262 = vpack.c.b16 %v2233, %v2232
    %v2263 = vpack.c.b16 %v2235, %v2234
    %v2264 = vpack.c.b16 %v2237, %v2236
    %v2265 = vpack.c.b16 %v2239, %v2238
    %v2266 = vpack.c.b16 %v2241, %v2240
    %v2267 = vpack.c.b16 %v2243, %v2242
    %v2268 = vpack.c.b16 %v2245, %v2244
    %v2269 = vpack.c.b16 %v2247, %v2246
    %v2270 = vpack.c.b16 %v2249, %v2248
    %v2271 = vpack.c.b16 %v2251, %v2250
    %v2272 = vpack.c.b16 %v2253, %v2252
    %v2273 = vpack.c.b16 %v2255, %v2254
    %v2274 = vpack.c.b16 %v2257, %v2256
    %v2275 = vpack.c.b16 %v2259, %v2258
    %2292 = vmatpush.bf16.msra.mxu0 %v2267
    %2293 = vmatpush.bf16.msra.mxu0 %v2266
    %2294 = vmatpush.bf16.msra.mxu0 %v2265
    %2295 = vmatpush.bf16.msra.mxu0 %v2264
    %2296 = vmatpush.bf16.msra.mxu0 %v2263
    %2297 = vmatpush.bf16.msra.mxu0 %v2262
    %2298 = vmatpush.bf16.msra.mxu0 %v2261
    %2299 = vmatpush.bf16.msra.mxu0 %v2260
    %2300 = vmatmul.bf16.gmra.mxu0 %v2158
    %v2301 = vpop.f32.mrf.mxu0
    %v2302 = vadd.f32 %v2194, %v2301
    %v2303 = vpop.f32.mrf.mxu0
    %2304 = vdwg.mxu0
    %2305 = vmatpush.bf16.msra.mxu0 %v2275
    %2306 = vmatpush.bf16.msra.mxu0 %v2274
    %2307 = vmatpush.bf16.msra.mxu0 %v2273
    %2308 = vmatpush.bf16.msra.mxu0 %v2272
    %2309 = vmatpush.bf16.msra.mxu0 %v2271
    %2310 = vmatpush.bf16.msra.mxu0 %v2270
    %2311 = vmatpush.bf16.msra.mxu0 %v2269
    %2312 = vmatpush.bf16.msra.mxu0 %v2268
    %2313 = vmatmul.bf16.gmra.mxu0 %v2159
    %v2314 = vpop.f32.mrf.mxu0
    %v2315 = vadd.f32 %v2302, %v2314
    %v2316 = vpop.f32.mrf.mxu0
    %2317 = vdwg.mxu0
    %v2318 = vmax.f32 %v2315, 0.0
    %v2319 = vpack.c.bf16 %v2318, %v2318
    %v2320 = vld [vmem:[%s7] sm:$0xf]
    %v2321 = vld [vmem:[%s7 + $0x4] sm:$0xf]
    %v2322 = vld [vmem:[%s7 + $0x8] sm:$0xf]
    %v2323 = vld [vmem:[%s7 + $0xc] sm:$0xf]
    %v2324 = vld [vmem:[%s7 + $0x10] sm:$0xf]
    %v2325 = vld [vmem:[%s7 + $0x14] sm:$0xf]
    %v2326 = vld [vmem:[%s7 + $0x18] sm:$0xf]
    %v2327 = vld [vmem:[%s7 + $0x1c] sm:$0xf]
    %v2328 = vld [vmem:[%s7 + $0x20] sm:$0xf]
    %v2329 = vld [vmem:[%s7 + $0x24] sm:$0xf]
    %v2330 = vld [vmem:[%s7 + $0x28] sm:$0xf]
    %v2331 = vld [vmem:[%s7 + $0x2c] sm:$0xf]
    %v2332 = vld [vmem:[%s7 + $0x30] sm:$0xf]
    %v2333 = vld [vmem:[%s7 + $0x34] sm:$0xf]
    %v2334 = vld [vmem:[%s7 + $0x38] sm:$0xf]
    %v2335 = vld [vmem:[%s7 + $0x3c] sm:$0xf]
    %v2336 = vld [vmem:[%s8] sm:$0x1]
    %v2338 = vperm.slane %v2336, 0
    %v2356 = vunpack.c.l.b16 %v2320
    %v2357 = vunpack.c.l.b16 %v2321
    %v2358 = vunpack.c.l.b16 %v2322
    %v2359 = vunpack.c.l.b16 %v2323
    %v2360 = vunpack.c.l.b16 %v2324
    %v2361 = vunpack.c.l.b16 %v2325
    %v2362 = vunpack.c.l.b16 %v2326
    %v2363 = vunpack.c.l.b16 %v2327
    %v2364 = vunpack.c.l.b16 %v2328
    %v2365 = vunpack.c.l.b16 %v2329
    %v2366 = vunpack.c.l.b16 %v2330
    %v2367 = vunpack.c.l.b16 %v2331
    %v2368 = vunpack.c.l.b16 %v2332
    %v2369 = vunpack.c.l.b16 %v2333
    %v2370 = vunpack.c.l.b16 %v2334
    %v2371 = vunpack.c.l.b16 %v2335
    %v2372 = vpack.c.b16 %v2357, %v2356
    %v2373 = vpack.c.b16 %v2359, %v2358
    %v2374 = vpack.c.b16 %v2361, %v2360
    %v2375 = vpack.c.b16 %v2363, %v2362
    %v2376 = vpack.c.b16 %v2365, %v2364
    %v2377 = vpack.c.b16 %v2367, %v2366
    %v2378 = vpack.c.b16 %v2369, %v2368
    %v2379 = vpack.c.b16 %v2371, %v2370
    %2388 = vmatpush.bf16.msra.mxu0 %v2379
    %2389 = vmatpush.bf16.msra.mxu0 %v2378
    %2390 = vmatpush.bf16.msra.mxu0 %v2377
    %2391 = vmatpush.bf16.msra.mxu0 %v2376
    %2392 = vmatpush.bf16.msra.mxu0 %v2375
    %2393 = vmatpush.bf16.msra.mxu0 %v2374
    %2394 = vmatpush.bf16.msra.mxu0 %v2373
    %2395 = vmatpush.bf16.msra.mxu0 %v2372
    %2396 = vmatmul.bf16.gmra.mxu0 %v2319
    %v2397 = vpop.f32.mrf.mxu0
    %v2398 = vadd.f32 %v2338, %v2397
    %v2399 = vpop.f32.mrf.mxu0
    %2400 = vdwg.mxu0
    %v2401 = vmax.f32 %v2398, 0.0
    %v2402 = vpack.c.bf16 %v2401, %v2401
    %v2403 = vld [vmem:[%s9] sm:$0xf]
    %v2404 = vld [vmem:[%s9 + $0x4] sm:$0xf]
    %v2405 = vld [vmem:[%s9 + $0x8] sm:$0xf]
    %v2406 = vld [vmem:[%s9 + $0xc] sm:$0xf]
    %v2407 = vld [vmem:[%s9 + $0x10] sm:$0xf]
    %v2408 = vld [vmem:[%s9 + $0x14] sm:$0xf]
    %v2409 = vld [vmem:[%s9 + $0x18] sm:$0xf]
    %v2410 = vld [vmem:[%s9 + $0x1c] sm:$0xf]
    %v2411 = vld [vmem:[%s10] sm:$0x1]
    %v2413 = vperm.slane %v2411, 0
    %v2423 = vunpack.c.l.b16 %v2403
    %v2424 = vunpack.c.l.b16 %v2404
    %v2425 = vunpack.c.l.b16 %v2405
    %v2426 = vunpack.c.l.b16 %v2406
    %v2427 = vunpack.c.l.b16 %v2407
    %v2428 = vunpack.c.l.b16 %v2408
    %v2429 = vunpack.c.l.b16 %v2409
    %v2430 = vunpack.c.l.b16 %v2410
    %v2431 = vpack.c.b16 %v2424, %v2423
    %v2432 = vpack.c.b16 %v2426, %v2425
    %v2433 = vpack.c.b16 %v2428, %v2427
    %v2434 = vpack.c.b16 %v2430, %v2429
    %vm2439 = vcmask 523264
    %v2441 = vsel %vm2439, %v2402, 0
    %2443 = vmatpush.bf16.msra.mxu0 0
    %2444 = vmatpush.bf16.msra.mxu0 0
    %2445 = vmatpush.bf16.msra.mxu0 0
    %2446 = vmatpush.bf16.msra.mxu0 0
    %2447 = vmatpush.bf16.msra.mxu0 %v2434
    %2448 = vmatpush.bf16.msra.mxu0 %v2433
    %2449 = vmatpush.bf16.msra.mxu0 %v2432
    %2450 = vmatpush.bf16.msra.mxu0 %v2431
    %2451 = vmatmul.bf16.gmra.mxu0 %v2441
    %v2452 = vpop.f32.mrf.mxu0
    %v2453 = vadd.f32 %v2413, %v2452
    %v2454 = vpop.f32.mrf.mxu0
    %2455 = vdwg.mxu0
    %2456 = vst [vmem:[#allocation7] sm:$0xff] %v2453
    // Predicated region
    $region54: #{net_forward.1} parent=1 // pred_check
      _
    $region55: #{net_forward.1} parent=1 // pred_check_branch
      %2458 = sbr.rel (0) target = $region57
    $region56: #{net_forward.1} parent=1 // pred_region
      %2460 = vsyncadd [#allocation4], 0
      %s2462 = sshll.u32 [#allocation7], 4
      %s2463 = int_to_ptr.vmem [resolvable:$true] %s2462
      %s2464 = sshll.u32 %s11, 4
      %s2465 = int_to_ptr.hbm [resolvable:$true] %s2464
      %2467 = dma.vmem_to_hbm [thread:$0]  %s2463, 128, %s2465, [#allocation4]
    $region57: #{net_forward.1} parent=1 // pred_fallthru
      _
    // Predicated region
    $region58: #{net_forward.1} parent=1 // pred_check
      _
    $region59: #{net_forward.1} parent=1 // pred_check_branch
      %2469 = sbr.rel (0) target = $region61
    $region60: #{net_forward.1} parent=1 // pred_region
      %2471 = dma.done [#allocation4], 128
    $region61: #{net_forward.1} parent=1 // pred_fallthru
      _
    %2472 = vsyncpa [#allocation3], 1
    %2473 = vsyncpa [#allocation6], 1
    %2474 = vsyncpa [#allocation4], 1

</llo_original>
